<compile_context>
chip_gen: v5e
topology: v5e:2x2
jax: 0.10.0
libtpu: 0.0.40
codegen_flags: <defaults>
</compile_context>

<pallas_src>
import functools

import jax
import jax.numpy as jnp
from jax.experimental import pallas as pl
from jax.experimental.pallas import tpu as pltpu

VMEM_SPEC = pl.BlockSpec(memory_space=pltpu.MemorySpace.VMEM)


# ------------------------------ fused kernel -------------------------------
def neural_pcg_fused_kernel(
    # graph operands (transposed / lane-dense)
    x_row_ref, ea_row_ref, diag_row_ref,
    grow_ref, growt_ref, gcolt_ref, invcnt_ref,
    # node encoder, edge encoder (Linear -> ReLU -> Linear, d_in = 1)
    wne1_ref, bne1_ref, wne2t_ref, bne2_ref,
    wee1_ref, bee1_ref, wee2t_ref, bee2_ref,
    # stacked message-passing parameters (leading axis = step, all transposed)
    we1at_ref, we1bt_ref, we1ct_ref, be1_ref, we2t_ref, be2_ref,
    wn1at_ref, wn1bt_ref, bn1_ref, wn2t_ref, bn2_ref,
    # decoder (transposed)
    wd1t_ref, bd1_ref, wd2c_ref, bd2_ref,
    # output
    out_ref,
    *, num_steps):
    f32 = jnp.float32
    bf16 = jnp.bfloat16

    # bf16 one-hot matrices: used directly as MXU operands (no f32 copy).
    grow = grow_ref[...]        # [E_pad, N_pad] bf16  (scatter operand)
    grow_t = growt_ref[...]     # [N_pad, E_pad] bf16  (row-gather operand)
    gcol_t = gcolt_ref[...]     # [N_pad, E_pad] bf16  (col-gather operand)
    inv_cnt = invcnt_ref[...]   # [1, N_pad] f32

    # --- encoders: first layer has K=1 -> VPU rank-1 broadcast (transposed) --
    x = jnp.maximum(wne1_ref[...] * x_row_ref[...] + bne1_ref[...], 0.0)
    x = jnp.dot(wne2t_ref[...], x, preferred_element_type=f32) + bne2_ref[...]   # [L, N_pad]
    e = jnp.maximum(wee1_ref[...] * ea_row_ref[...] + bee1_ref[...], 0.0)
    e = jnp.dot(wee2t_ref[...], e, preferred_element_type=f32) + bee2_ref[...]   # [L, E_pad]

    # --- message passing: latents stay resident in VMEM across all steps ---
    for s in range(num_steps):
        # project-then-gather (re-association): the LxL projections run over
        # N_pad columns; the gathers are bf16 x bf16 MXU dots against the
        # transposed one-hots (exact selection).
        px_a = jnp.dot(we1at_ref[s], x, preferred_element_type=f32)   # [L, N_pad]
        px_b = jnp.dot(we1bt_ref[s], x, preferred_element_type=f32)   # [L, N_pad]
        pe   = jnp.dot(we1ct_ref[s], e, preferred_element_type=f32)   # [L, E_pad]

        # edge_block first layer on concat([x[row], x[col], edge_attr]):
        #   W1a^T x[row] + W1b^T x[col] + W1c^T e  (weights pre-split/transposed)
        h = (jnp.dot(px_a.astype(bf16), grow_t, preferred_element_type=f32)
             + jnp.dot(px_b.astype(bf16), gcol_t, preferred_element_type=f32)
             + pe + be1_ref[s])
        h = jnp.maximum(h, 0.0)
        e = jnp.dot(we2t_ref[s], h, preferred_element_type=f32) + be2_ref[s]     # [L, E_pad]

        # scatter-mean onto source nodes: (e_t @ g_row) * (1/count)
        # plain MXU dot (no transposed contraction), bf16 x bf16 -> f32 acc.
        agg = jnp.dot(e.astype(bf16), grow, preferred_element_type=f32) * inv_cnt  # [L, N_pad]

        # node_block: MLP([2L, L, L]) on concat([x, aggregation])
        hn = (jnp.dot(wn1at_ref[s], x, preferred_element_type=f32)
              + jnp.dot(wn1bt_ref[s], agg, preferred_element_type=f32)
              + bn1_ref[s])
        hn = jnp.maximum(hn, 0.0)
        x = jnp.dot(wn2t_ref[s], hn, preferred_element_type=f32) + bn2_ref[s]     # [L, N_pad]

    # --- decoder (already transposed / lane-dense [1, E_pad] output) ---
    hd = jnp.maximum(
        jnp.dot(wd1t_ref[...], e, preferred_element_type=f32) + bd1_ref[...], 0.0)  # [L, E_pad]
    # final [1,L] matvec as VPU broadcast-multiply + sublane (XLU) reduction
    dec = jnp.sum(wd2c_ref[...] * hd, axis=0, keepdims=True) + bd2_ref[...]          # [1, E_pad]

    # transform_output_matrix: edge_values[diag] = 0.5 * sqrt(diag_vals)
    # (sqrt evaluated on all lanes; the where masks non-diagonal lanes, matching
    #  the torch reference which would also NaN on a non-positive diagonal)
    out_ref[...] = jnp.where(diag_row_ref[...] > 0.0,
                             0.5 * jnp.sqrt(ea_row_ref[...]),
                             dec)


# ------------------------------ parameter init ------------------------------
def _linear_params(key, d_in, d_out):
    kw, kb = jax.random.split(key)
    bound = 1.0 / jnp.sqrt(jnp.float32(d_in))
    w = jax.random.uniform(kw, (d_in, d_out), jnp.float32, -bound, bound)
    b = jax.random.uniform(kb, (1, d_out), jnp.float32, -bound, bound)
    return w, b


def _mlp2_params(key, d_in, d_hid, d_out):
    k1, k2 = jax.random.split(key)
    w1, b1 = _linear_params(k1, d_in, d_hid)
    w2, b2 = _linear_params(k2, d_hid, d_out)
    return (w1, b1, w2, b2)


def init_neural_pcg_params(key, latent_size, message_passing_steps):
    L = latent_size
    keys = jax.random.split(key, 3 + 2 * message_passing_steps)
    params = {
        "encoder_nodes": _mlp2_params(keys[0], 1, L, L),
        "encoder_edges": _mlp2_params(keys[1], 1, L, L),
        "decoder_edges": _mlp2_params(keys[2], L, L, 1),
        "message_passing": [],
    }
    for i in range(message_passing_steps):
        edge_p = _mlp2_params(keys[3 + 2 * i], 3 * L, L, L)   # edge_block
        node_p = _mlp2_params(keys[4 + 2 * i], 2 * L, L, L)   # node_block
        params["message_passing"].append((edge_p, node_p))
    return params


def _stack_mp_params(mp_params, L):
    """Pre-split the concat weights into transposed [L,L] tiles, stack over steps."""
    we1at, we1bt, we1ct, be1, we2t, be2 = [], [], [], [], [], []
    wn1at, wn1bt, bn1, wn2t, bn2 = [], [], [], [], []
    for edge_p, node_p in mp_params:
        w1e, b1e, w2e, b2e = edge_p
        w1n, b1n, w2n, b2n = node_p
        we1at.append(w1e[0:L].T)
        we1bt.append(w1e[L:2 * L].T)
        we1ct.append(w1e[2 * L:3 * L].T)
        be1.append(b1e.T); we2t.append(w2e.T); be2.append(b2e.T)
        wn1at.append(w1n[0:L].T); wn1bt.append(w1n[L:2 * L].T)
        bn1.append(b1n.T); wn2t.append(w2n.T); bn2.append(b2n.T)
    st = lambda xs: jnp.stack(xs, axis=0)
    return (st(we1at), st(we1bt), st(we1ct), st(be1), st(we2t), st(be2),
            st(wn1at), st(wn1bt), st(bn1), st(wn2t), st(bn2))


# ------------------------------- forward pass -------------------------------
def neural_pcg_forward(params, x_nodes, edge_attr, edge_index):
    """x_nodes: [N,1] f32, edge_attr: [E,1] f32, edge_index: [2,E] i32."""
    N = x_nodes.shape[0]
    E = edge_attr.shape[0]
    L = params["encoder_nodes"][2].shape[0]
    S = len(params["message_passing"])

    # pad nodes AND edges to lane multiples: everything is lane-dense in the
    # transposed layout ([L, N_pad] / [L, E_pad]).
    N_pad = max(128, ((N + 127) // 128) * 128)
    E_pad = max(128, ((E + 127) // 128) * 128)

    row = edge_index[0].astype(jnp.int32)
    col = edge_index[1].astype(jnp.int32)

    # bf16 one-hot gather/scatter matrices (exact for 0/1, half footprint);
    # padded edges use an out-of-range index -> all-zero one-hot rows/cols.
    pad_idx = jnp.full((E_pad - E,), N_pad, jnp.int32)
    row_p = jnp.concatenate([row, pad_idx])
    col_p = jnp.concatenate([col, pad_idx])
    g_row = jax.nn.one_hot(row_p, N_pad, dtype=jnp.bfloat16)             # [E_pad, N_pad]
    g_row_t = jax.nn.one_hot(row_p, N_pad, dtype=jnp.bfloat16, axis=0)   # [N_pad, E_pad]
    g_col_t = jax.nn.one_hot(col_p, N_pad, dtype=jnp.bfloat16, axis=0)   # [N_pad, E_pad]

    counts = jnp.zeros((N_pad,), jnp.float32).at[row].add(1.0)
    inv_counts = jnp.where(counts > 0.0,
                           1.0 / jnp.maximum(counts, 1.0), 0.0)[None, :]  # [1, N_pad]

    x_row = jnp.zeros((1, N_pad), jnp.float32).at[0, :N].set(
        x_nodes[:, 0].astype(jnp.float32))
    ea_row = jnp.zeros((1, E_pad), jnp.float32).at[0, :E].set(
        edge_attr[:, 0].astype(jnp.float32))
    diag_row = jnp.zeros((1, E_pad), jnp.float32).at[0, :E].set(
        (row == col).astype(jnp.float32))

    wne1, bne1, wne2, bne2 = params["encoder_nodes"]
    wee1, bee1, wee2, bee2 = params["encoder_edges"]
    wd1, bd1, wd2, bd2 = params["decoder_edges"]
    stacked = _stack_mp_params(params["message_passing"], L)

    operands = (
        x_row, ea_row, diag_row, g_row, g_row_t, g_col_t, inv_counts,
        wne1.T, bne1.T, wne2.T, bne2.T,
        wee1.T, bee1.T, wee2.T, bee2.T,
        *stacked,
        wd1.T, bd1.T, wd2, bd2,
    )

    flops = int(
        2 * L * (1 + L) * (N_pad + E_pad)                      # encoders
        + S * (2 * L * L * (2 * N_pad + E_pad)                 # projections
               + 4 * L * N_pad * E_pad                         # two gathers
               + 2 * L * L * E_pad                             # edge W2
               + 2 * L * N_pad * E_pad                         # scatter
               + 6 * L * L * N_pad)                            # node block
        + 2 * E_pad * L * (L + 1))                             # decoder
    bytes_accessed = int(sum(a.size * a.dtype.itemsize for a in operands)
                         + E_pad * 4)

    # TODO(synk): per-generation vmem_limit_bytes (~100 MiB v5e/v6e, <=48 MiB
    # v7x) once this is tiled over E-blocks for realistic graph sizes.
    out_row = pl.pallas_call(
        functools.partial(neural_pcg_fused_kernel, num_steps=S),
        out_shape=jax.ShapeDtypeStruct((1, E_pad), jnp.float32),
        in_specs=[VMEM_SPEC] * len(operands),
        out_specs=VMEM_SPEC,
        compiler_params=pltpu.CompilerParams(
            vmem_limit_bytes=32 * 1024 * 1024),
        cost_estimate=pl.CostEstimate(flops=flops,
                                      transcendentals=int(E_pad),
                                      bytes_accessed=bytes_accessed),
    )(*operands)

    edge_values = out_row[0, :E][:, None]                       # [E, 1]

    # transform_output_matrix (training-mode path): symmetrize, keep upper
    # triangle (row <= col), coalesce duplicates by summation.
    # TODO(synk): torch.sparse_coo_tensor(...).coalesce() (and the
    # inference-mode scipy CSR path) has no Pallas/JAX sparse equivalent;
    # the coalesced matrix is materialized densely here.
    trans_index = jnp.stack([col, row], axis=0)
    sym_index = jnp.concatenate([edge_index, trans_index], axis=1)   # [2, 2E]
    sym_value = jnp.concatenate([edge_values, edge_values], axis=0)[:, 0]
    m = sym_index[0] <= sym_index[1]
    vals = jnp.where(m, sym_value, 0.0)
    t_dense = jnp.zeros((N, N), jnp.float32).at[
        sym_index[0], sym_index[1]].add(vals)
    return edge_values, t_dense


# ----------------------------------- main -----------------------------------
if __name__ == "__main__":
    LATENT = 32
    MP_STEPS = 2
    N = 16

    key = jax.random.PRNGKey(0)
    k_param, k_x, k_e = jax.random.split(key, 3)

    params = init_neural_pcg_params(k_param, LATENT, MP_STEPS)

    # synthetic graph: self-loops (diagonal) + bidirectional ring edges
    nodes = jnp.arange(N, dtype=jnp.int32)
    rows = jnp.concatenate([nodes, nodes, (nodes + 1) % N])
    cols = jnp.concatenate([nodes, (nodes + 1) % N, nodes])
    edge_index = jnp.stack([rows, cols], axis=0)                 # [2, 48]
    E = edge_index.shape[1]

    x_nodes = jax.random.normal(k_x, (N, 1), jnp.float32)
    edge_attr = jnp.abs(jax.random.normal(k_e, (E, 1), jnp.float32)) + 0.1

    fwd = jax.jit(functools.partial(neural_pcg_forward, params))
    edge_values, t_dense = fwd(x_nodes, edge_attr, edge_index)
    jax.block_until_ready((edge_values, t_dense))

    assert edge_values.shape == (E, 1)
    assert t_dense.shape == (N, N)
    assert bool(jnp.all(jnp.isfinite(edge_values)))
    assert bool(jnp.all(jnp.isfinite(t_dense)))
    print("KERNEL_OK")
</pallas_src>

<mosaic_0001>
module attributes {stable_mosaic.version = 11 : i64} {
  func.func @neural_pcg_fused_kernel(%arg0: memref<1x128xf32, #tpu.memory_space<vmem>>, %arg1: memref<1x128xf32, #tpu.memory_space<vmem>>, %arg2: memref<1x128xf32, #tpu.memory_space<vmem>>, %arg3: memref<128x128xbf16, #tpu.memory_space<vmem>>, %arg4: memref<128x128xbf16, #tpu.memory_space<vmem>>, %arg5: memref<128x128xbf16, #tpu.memory_space<vmem>>, %arg6: memref<1x128xf32, #tpu.memory_space<vmem>>, %arg7: memref<32x1xf32, #tpu.memory_space<vmem>>, %arg8: memref<32x1xf32, #tpu.memory_space<vmem>>, %arg9: memref<32x32xf32, #tpu.memory_space<vmem>>, %arg10: memref<32x1xf32, #tpu.memory_space<vmem>>, %arg11: memref<32x1xf32, #tpu.memory_space<vmem>>, %arg12: memref<32x1xf32, #tpu.memory_space<vmem>>, %arg13: memref<32x32xf32, #tpu.memory_space<vmem>>, %arg14: memref<32x1xf32, #tpu.memory_space<vmem>>, %arg15: memref<2x32x32xf32, #tpu.memory_space<vmem>>, %arg16: memref<2x32x32xf32, #tpu.memory_space<vmem>>, %arg17: memref<2x32x32xf32, #tpu.memory_space<vmem>>, %arg18: memref<2x32x1xf32, #tpu.memory_space<vmem>>, %arg19: memref<2x32x32xf32, #tpu.memory_space<vmem>>, %arg20: memref<2x32x1xf32, #tpu.memory_space<vmem>>, %arg21: memref<2x32x32xf32, #tpu.memory_space<vmem>>, %arg22: memref<2x32x32xf32, #tpu.memory_space<vmem>>, %arg23: memref<2x32x1xf32, #tpu.memory_space<vmem>>, %arg24: memref<2x32x32xf32, #tpu.memory_space<vmem>>, %arg25: memref<2x32x1xf32, #tpu.memory_space<vmem>>, %arg26: memref<32x32xf32, #tpu.memory_space<vmem>>, %arg27: memref<32x1xf32, #tpu.memory_space<vmem>>, %arg28: memref<32x1xf32, #tpu.memory_space<vmem>>, %arg29: memref<1x1xf32, #tpu.memory_space<vmem>>, %arg30: memref<1x128xf32, #tpu.memory_space<vmem>>) attributes {dimension_semantics = [], scalar_prefetch = 0 : i64, scratch_operands = 0 : i64, tpu.core_type = #tpu.core_type<tc>} {
    %c0 = arith.constant 0 : index
    %c0_0 = arith.constant 0 : index
    %0 = vector.load %arg3[%c0, %c0_0] : memref<128x128xbf16, #tpu.memory_space<vmem>>, vector<128x128xbf16>
    %c0_1 = arith.constant 0 : index
    %c0_2 = arith.constant 0 : index
    %1 = vector.load %arg4[%c0_1, %c0_2] : memref<128x128xbf16, #tpu.memory_space<vmem>>, vector<128x128xbf16>
    %c0_3 = arith.constant 0 : index
    %c0_4 = arith.constant 0 : index
    %2 = vector.load %arg5[%c0_3, %c0_4] : memref<128x128xbf16, #tpu.memory_space<vmem>>, vector<128x128xbf16>
    %c0_5 = arith.constant 0 : index
    %c0_6 = arith.constant 0 : index
    %3 = vector.load %arg6[%c0_5, %c0_6] : memref<1x128xf32, #tpu.memory_space<vmem>>, vector<1x128xf32>
    %c0_7 = arith.constant 0 : index
    %c0_8 = arith.constant 0 : index
    %4 = vector.load %arg7[%c0_7, %c0_8] : memref<32x1xf32, #tpu.memory_space<vmem>>, vector<32x1xf32>
    %c0_9 = arith.constant 0 : index
    %c0_10 = arith.constant 0 : index
    %5 = vector.load %arg0[%c0_9, %c0_10] : memref<1x128xf32, #tpu.memory_space<vmem>>, vector<1x128xf32>
    %6 = vector.broadcast %4 : vector<32x1xf32> to vector<32x128xf32>
    %7 = vector.broadcast %5 : vector<1x128xf32> to vector<32x128xf32>
    %8 = arith.mulf %6, %7 : vector<32x128xf32>
    %c0_11 = arith.constant 0 : index
    %c0_12 = arith.constant 0 : index
    %9 = vector.load %arg8[%c0_11, %c0_12] : memref<32x1xf32, #tpu.memory_space<vmem>>, vector<32x1xf32>
    %10 = vector.broadcast %9 : vector<32x1xf32> to vector<32x128xf32>
    %11 = arith.addf %8, %10 : vector<32x128xf32>
    %cst = arith.constant 0.000000e+00 : f32
    %12 = vector.broadcast %cst : f32 to vector<32x128xf32>
    %13 = arith.maximumf %11, %12 : vector<32x128xf32>
    %c0_13 = arith.constant 0 : index
    %c0_14 = arith.constant 0 : index
    %14 = vector.load %arg9[%c0_13, %c0_14] : memref<32x32xf32, #tpu.memory_space<vmem>>, vector<32x32xf32>
    %cst_15 = arith.constant dense<0.000000e+00> : vector<32x128xf32>
    %15 = tpu.matmul %14, %13, %cst_15 {dimension_numbers = #tpu.dot_dimension_numbers<[1], [0], [0], [1], [0, 0, 1, 1], [], []>} : vector<32x32xf32>, vector<32x128xf32>, vector<32x128xf32> -> vector<32x128xf32>
    %c0_16 = arith.constant 0 : index
    %c0_17 = arith.constant 0 : index
    %16 = vector.load %arg10[%c0_16, %c0_17] : memref<32x1xf32, #tpu.memory_space<vmem>>, vector<32x1xf32>
    %17 = vector.broadcast %16 : vector<32x1xf32> to vector<32x128xf32>
    %18 = arith.addf %15, %17 : vector<32x128xf32>
    %c0_18 = arith.constant 0 : index
    %c0_19 = arith.constant 0 : index
    %19 = vector.load %arg11[%c0_18, %c0_19] : memref<32x1xf32, #tpu.memory_space<vmem>>, vector<32x1xf32>
    %c0_20 = arith.constant 0 : index
    %c0_21 = arith.constant 0 : index
    %20 = vector.load %arg1[%c0_20, %c0_21] : memref<1x128xf32, #tpu.memory_space<vmem>>, vector<1x128xf32>
    %21 = vector.broadcast %19 : vector<32x1xf32> to vector<32x128xf32>
    %22 = vector.broadcast %20 : vector<1x128xf32> to vector<32x128xf32>
    %23 = arith.mulf %21, %22 : vector<32x128xf32>
    %c0_22 = arith.constant 0 : index
    %c0_23 = arith.constant 0 : index
    %24 = vector.load %arg12[%c0_22, %c0_23] : memref<32x1xf32, #tpu.memory_space<vmem>>, vector<32x1xf32>
    %25 = vector.broadcast %24 : vector<32x1xf32> to vector<32x128xf32>
    %26 = arith.addf %23, %25 : vector<32x128xf32>
    %cst_24 = arith.constant 0.000000e+00 : f32
    %27 = vector.broadcast %cst_24 : f32 to vector<32x128xf32>
    %28 = arith.maximumf %26, %27 : vector<32x128xf32>
    %c0_25 = arith.constant 0 : index
    %c0_26 = arith.constant 0 : index
    %29 = vector.load %arg13[%c0_25, %c0_26] : memref<32x32xf32, #tpu.memory_space<vmem>>, vector<32x32xf32>
    %cst_27 = arith.constant dense<0.000000e+00> : vector<32x128xf32>
    %30 = tpu.matmul %29, %28, %cst_27 {dimension_numbers = #tpu.dot_dimension_numbers<[1], [0], [0], [1], [0, 0, 1, 1], [], []>} : vector<32x32xf32>, vector<32x128xf32>, vector<32x128xf32> -> vector<32x128xf32>
    %c0_28 = arith.constant 0 : index
    %c0_29 = arith.constant 0 : index
    %31 = vector.load %arg14[%c0_28, %c0_29] : memref<32x1xf32, #tpu.memory_space<vmem>>, vector<32x1xf32>
    %32 = vector.broadcast %31 : vector<32x1xf32> to vector<32x128xf32>
    %33 = arith.addf %30, %32 : vector<32x128xf32>
    %c0_30 = arith.constant 0 : index
    %c0_31 = arith.constant 0 : index
    %c0_32 = arith.constant 0 : index
    %34 = vector.load %arg15[%c0_30, %c0_31, %c0_32] : memref<2x32x32xf32, #tpu.memory_space<vmem>>, vector<1x32x32xf32>
    %35 = vector.shape_cast %34 : vector<1x32x32xf32> to vector<32x32xf32>
    %cst_33 = arith.constant dense<0.000000e+00> : vector<32x128xf32>
    %36 = tpu.matmul %35, %18, %cst_33 {dimension_numbers = #tpu.dot_dimension_numbers<[1], [0], [0], [1], [0, 0, 1, 1], [], []>} : vector<32x32xf32>, vector<32x128xf32>, vector<32x128xf32> -> vector<32x128xf32>
    %c0_34 = arith.constant 0 : index
    %c0_35 = arith.constant 0 : index
    %c0_36 = arith.constant 0 : index
    %37 = vector.load %arg16[%c0_34, %c0_35, %c0_36] : memref<2x32x32xf32, #tpu.memory_space<vmem>>, vector<1x32x32xf32>
    %38 = vector.shape_cast %37 : vector<1x32x32xf32> to vector<32x32xf32>
    %cst_37 = arith.constant dense<0.000000e+00> : vector<32x128xf32>
    %39 = tpu.matmul %38, %18, %cst_37 {dimension_numbers = #tpu.dot_dimension_numbers<[1], [0], [0], [1], [0, 0, 1, 1], [], []>} : vector<32x32xf32>, vector<32x128xf32>, vector<32x128xf32> -> vector<32x128xf32>
    %c0_38 = arith.constant 0 : index
    %c0_39 = arith.constant 0 : index
    %c0_40 = arith.constant 0 : index
    %40 = vector.load %arg17[%c0_38, %c0_39, %c0_40] : memref<2x32x32xf32, #tpu.memory_space<vmem>>, vector<1x32x32xf32>
    %41 = vector.shape_cast %40 : vector<1x32x32xf32> to vector<32x32xf32>
    %cst_41 = arith.constant dense<0.000000e+00> : vector<32x128xf32>
    %42 = tpu.matmul %41, %33, %cst_41 {dimension_numbers = #tpu.dot_dimension_numbers<[1], [0], [0], [1], [0, 0, 1, 1], [], []>} : vector<32x32xf32>, vector<32x128xf32>, vector<32x128xf32> -> vector<32x128xf32>
    %43 = arith.truncf %36 : vector<32x128xf32> to vector<32x128xbf16>
    %cst_42 = arith.constant dense<0.000000e+00> : vector<32x128xf32>
    %44 = tpu.matmul %43, %1, %cst_42 {dimension_numbers = #tpu.dot_dimension_numbers<[1], [0], [0], [1], [0, 0, 1, 1], [], []>} : vector<32x128xbf16>, vector<128x128xbf16>, vector<32x128xf32> -> vector<32x128xf32>
    %45 = arith.truncf %39 : vector<32x128xf32> to vector<32x128xbf16>
    %cst_43 = arith.constant dense<0.000000e+00> : vector<32x128xf32>
    %46 = tpu.matmul %45, %2, %cst_43 {dimension_numbers = #tpu.dot_dimension_numbers<[1], [0], [0], [1], [0, 0, 1, 1], [], []>} : vector<32x128xbf16>, vector<128x128xbf16>, vector<32x128xf32> -> vector<32x128xf32>
    %47 = arith.addf %44, %46 : vector<32x128xf32>
    %48 = arith.addf %47, %42 : vector<32x128xf32>
    %c0_44 = arith.constant 0 : index
    %c0_45 = arith.constant 0 : index
    %c0_46 = arith.constant 0 : index
    %49 = vector.load %arg18[%c0_44, %c0_45, %c0_46] : memref<2x32x1xf32, #tpu.memory_space<vmem>>, vector<1x32x1xf32>
    %50 = vector.shape_cast %49 : vector<1x32x1xf32> to vector<32x1xf32>
    %51 = vector.broadcast %50 : vector<32x1xf32> to vector<32x128xf32>
    %52 = arith.addf %48, %51 : vector<32x128xf32>
    %cst_47 = arith.constant 0.000000e+00 : f32
    %53 = vector.broadcast %cst_47 : f32 to vector<32x128xf32>
    %54 = arith.maximumf %52, %53 : vector<32x128xf32>
    %c0_48 = arith.constant 0 : index
    %c0_49 = arith.constant 0 : index
    %c0_50 = arith.constant 0 : index
    %55 = vector.load %arg19[%c0_48, %c0_49, %c0_50] : memref<2x32x32xf32, #tpu.memory_space<vmem>>, vector<1x32x32xf32>
    %56 = vector.shape_cast %55 : vector<1x32x32xf32> to vector<32x32xf32>
    %cst_51 = arith.constant dense<0.000000e+00> : vector<32x128xf32>
    %57 = tpu.matmul %56, %54, %cst_51 {dimension_numbers = #tpu.dot_dimension_numbers<[1], [0], [0], [1], [0, 0, 1, 1], [], []>} : vector<32x32xf32>, vector<32x128xf32>, vector<32x128xf32> -> vector<32x128xf32>
    %c0_52 = arith.constant 0 : index
    %c0_53 = arith.constant 0 : index
    %c0_54 = arith.constant 0 : index
    %58 = vector.load %arg20[%c0_52, %c0_53, %c0_54] : memref<2x32x1xf32, #tpu.memory_space<vmem>>, vector<1x32x1xf32>
    %59 = vector.shape_cast %58 : vector<1x32x1xf32> to vector<32x1xf32>
    %60 = vector.broadcast %59 : vector<32x1xf32> to vector<32x128xf32>
    %61 = arith.addf %57, %60 : vector<32x128xf32>
    %62 = arith.truncf %61 : vector<32x128xf32> to vector<32x128xbf16>
    %cst_55 = arith.constant dense<0.000000e+00> : vector<32x128xf32>
    %63 = tpu.matmul %62, %0, %cst_55 {dimension_numbers = #tpu.dot_dimension_numbers<[1], [0], [0], [1], [0, 0, 1, 1], [], []>} : vector<32x128xbf16>, vector<128x128xbf16>, vector<32x128xf32> -> vector<32x128xf32>
    %64 = vector.broadcast %3 : vector<1x128xf32> to vector<32x128xf32>
    %65 = arith.mulf %63, %64 : vector<32x128xf32>
    %c0_56 = arith.constant 0 : index
    %c0_57 = arith.constant 0 : index
    %c0_58 = arith.constant 0 : index
    %66 = vector.load %arg21[%c0_56, %c0_57, %c0_58] : memref<2x32x32xf32, #tpu.memory_space<vmem>>, vector<1x32x32xf32>
    %67 = vector.shape_cast %66 : vector<1x32x32xf32> to vector<32x32xf32>
    %cst_59 = arith.constant dense<0.000000e+00> : vector<32x128xf32>
    %68 = tpu.matmul %67, %18, %cst_59 {dimension_numbers = #tpu.dot_dimension_numbers<[1], [0], [0], [1], [0, 0, 1, 1], [], []>} : vector<32x32xf32>, vector<32x128xf32>, vector<32x128xf32> -> vector<32x128xf32>
    %c0_60 = arith.constant 0 : index
    %c0_61 = arith.constant 0 : index
    %c0_62 = arith.constant 0 : index
    %69 = vector.load %arg22[%c0_60, %c0_61, %c0_62] : memref<2x32x32xf32, #tpu.memory_space<vmem>>, vector<1x32x32xf32>
    %70 = vector.shape_cast %69 : vector<1x32x32xf32> to vector<32x32xf32>
    %cst_63 = arith.constant dense<0.000000e+00> : vector<32x128xf32>
    %71 = tpu.matmul %70, %65, %cst_63 {dimension_numbers = #tpu.dot_dimension_numbers<[1], [0], [0], [1], [0, 0, 1, 1], [], []>} : vector<32x32xf32>, vector<32x128xf32>, vector<32x128xf32> -> vector<32x128xf32>
    %72 = arith.addf %68, %71 : vector<32x128xf32>
    %c0_64 = arith.constant 0 : index
    %c0_65 = arith.constant 0 : index
    %c0_66 = arith.constant 0 : index
    %73 = vector.load %arg23[%c0_64, %c0_65, %c0_66] : memref<2x32x1xf32, #tpu.memory_space<vmem>>, vector<1x32x1xf32>
    %74 = vector.shape_cast %73 : vector<1x32x1xf32> to vector<32x1xf32>
    %75 = vector.broadcast %74 : vector<32x1xf32> to vector<32x128xf32>
    %76 = arith.addf %72, %75 : vector<32x128xf32>
    %cst_67 = arith.constant 0.000000e+00 : f32
    %77 = vector.broadcast %cst_67 : f32 to vector<32x128xf32>
    %78 = arith.maximumf %76, %77 : vector<32x128xf32>
    %c0_68 = arith.constant 0 : index
    %c0_69 = arith.constant 0 : index
    %c0_70 = arith.constant 0 : index
    %79 = vector.load %arg24[%c0_68, %c0_69, %c0_70] : memref<2x32x32xf32, #tpu.memory_space<vmem>>, vector<1x32x32xf32>
    %80 = vector.shape_cast %79 : vector<1x32x32xf32> to vector<32x32xf32>
    %cst_71 = arith.constant dense<0.000000e+00> : vector<32x128xf32>
    %81 = tpu.matmul %80, %78, %cst_71 {dimension_numbers = #tpu.dot_dimension_numbers<[1], [0], [0], [1], [0, 0, 1, 1], [], []>} : vector<32x32xf32>, vector<32x128xf32>, vector<32x128xf32> -> vector<32x128xf32>
    %c0_72 = arith.constant 0 : index
    %c0_73 = arith.constant 0 : index
    %c0_74 = arith.constant 0 : index
    %82 = vector.load %arg25[%c0_72, %c0_73, %c0_74] : memref<2x32x1xf32, #tpu.memory_space<vmem>>, vector<1x32x1xf32>
    %83 = vector.shape_cast %82 : vector<1x32x1xf32> to vector<32x1xf32>
    %84 = vector.broadcast %83 : vector<32x1xf32> to vector<32x128xf32>
    %85 = arith.addf %81, %84 : vector<32x128xf32>
    %c1 = arith.constant 1 : index
    %c0_75 = arith.constant 0 : index
    %c0_76 = arith.constant 0 : index
    %86 = vector.load %arg15[%c1, %c0_75, %c0_76] : memref<2x32x32xf32, #tpu.memory_space<vmem>>, vector<1x32x32xf32>
    %87 = vector.shape_cast %86 : vector<1x32x32xf32> to vector<32x32xf32>
    %cst_77 = arith.constant dense<0.000000e+00> : vector<32x128xf32>
    %88 = tpu.matmul %87, %85, %cst_77 {dimension_numbers = #tpu.dot_dimension_numbers<[1], [0], [0], [1], [0, 0, 1, 1], [], []>} : vector<32x32xf32>, vector<32x128xf32>, vector<32x128xf32> -> vector<32x128xf32>
    %c1_78 = arith.constant 1 : index
    %c0_79 = arith.constant 0 : index
    %c0_80 = arith.constant 0 : index
    %89 = vector.load %arg16[%c1_78, %c0_79, %c0_80] : memref<2x32x32xf32, #tpu.memory_space<vmem>>, vector<1x32x32xf32>
    %90 = vector.shape_cast %89 : vector<1x32x32xf32> to vector<32x32xf32>
    %cst_81 = arith.constant dense<0.000000e+00> : vector<32x128xf32>
    %91 = tpu.matmul %90, %85, %cst_81 {dimension_numbers = #tpu.dot_dimension_numbers<[1], [0], [0], [1], [0, 0, 1, 1], [], []>} : vector<32x32xf32>, vector<32x128xf32>, vector<32x128xf32> -> vector<32x128xf32>
    %c1_82 = arith.constant 1 : index
    %c0_83 = arith.constant 0 : index
    %c0_84 = arith.constant 0 : index
    %92 = vector.load %arg17[%c1_82, %c0_83, %c0_84] : memref<2x32x32xf32, #tpu.memory_space<vmem>>, vector<1x32x32xf32>
    %93 = vector.shape_cast %92 : vector<1x32x32xf32> to vector<32x32xf32>
    %cst_85 = arith.constant dense<0.000000e+00> : vector<32x128xf32>
    %94 = tpu.matmul %93, %61, %cst_85 {dimension_numbers = #tpu.dot_dimension_numbers<[1], [0], [0], [1], [0, 0, 1, 1], [], []>} : vector<32x32xf32>, vector<32x128xf32>, vector<32x128xf32> -> vector<32x128xf32>
    %95 = arith.truncf %88 : vector<32x128xf32> to vector<32x128xbf16>
    %cst_86 = arith.constant dense<0.000000e+00> : vector<32x128xf32>
    %96 = tpu.matmul %95, %1, %cst_86 {dimension_numbers = #tpu.dot_dimension_numbers<[1], [0], [0], [1], [0, 0, 1, 1], [], []>} : vector<32x128xbf16>, vector<128x128xbf16>, vector<32x128xf32> -> vector<32x128xf32>
    %97 = arith.truncf %91 : vector<32x128xf32> to vector<32x128xbf16>
    %cst_87 = arith.constant dense<0.000000e+00> : vector<32x128xf32>
    %98 = tpu.matmul %97, %2, %cst_87 {dimension_numbers = #tpu.dot_dimension_numbers<[1], [0], [0], [1], [0, 0, 1, 1], [], []>} : vector<32x128xbf16>, vector<128x128xbf16>, vector<32x128xf32> -> vector<32x128xf32>
    %99 = arith.addf %96, %98 : vector<32x128xf32>
    %100 = arith.addf %99, %94 : vector<32x128xf32>
    %c1_88 = arith.constant 1 : index
    %c0_89 = arith.constant 0 : index
    %c0_90 = arith.constant 0 : index
    %101 = vector.load %arg18[%c1_88, %c0_89, %c0_90] : memref<2x32x1xf32, #tpu.memory_space<vmem>>, vector<1x32x1xf32>
    %102 = vector.shape_cast %101 : vector<1x32x1xf32> to vector<32x1xf32>
    %103 = vector.broadcast %102 : vector<32x1xf32> to vector<32x128xf32>
    %104 = arith.addf %100, %103 : vector<32x128xf32>
    %cst_91 = arith.constant 0.000000e+00 : f32
    %105 = vector.broadcast %cst_91 : f32 to vector<32x128xf32>
    %106 = arith.maximumf %104, %105 : vector<32x128xf32>
    %c1_92 = arith.constant 1 : index
    %c0_93 = arith.constant 0 : index
    %c0_94 = arith.constant 0 : index
    %107 = vector.load %arg19[%c1_92, %c0_93, %c0_94] : memref<2x32x32xf32, #tpu.memory_space<vmem>>, vector<1x32x32xf32>
    %108 = vector.shape_cast %107 : vector<1x32x32xf32> to vector<32x32xf32>
    %cst_95 = arith.constant dense<0.000000e+00> : vector<32x128xf32>
    %109 = tpu.matmul %108, %106, %cst_95 {dimension_numbers = #tpu.dot_dimension_numbers<[1], [0], [0], [1], [0, 0, 1, 1], [], []>} : vector<32x32xf32>, vector<32x128xf32>, vector<32x128xf32> -> vector<32x128xf32>
    %c1_96 = arith.constant 1 : index
    %c0_97 = arith.constant 0 : index
    %c0_98 = arith.constant 0 : index
    %110 = vector.load %arg20[%c1_96, %c0_97, %c0_98] : memref<2x32x1xf32, #tpu.memory_space<vmem>>, vector<1x32x1xf32>
    %111 = vector.shape_cast %110 : vector<1x32x1xf32> to vector<32x1xf32>
    %112 = vector.broadcast %111 : vector<32x1xf32> to vector<32x128xf32>
    %113 = arith.addf %109, %112 : vector<32x128xf32>
    %c0_99 = arith.constant 0 : index
    %c0_100 = arith.constant 0 : index
    %114 = vector.load %arg26[%c0_99, %c0_100] : memref<32x32xf32, #tpu.memory_space<vmem>>, vector<32x32xf32>
    %cst_101 = arith.constant dense<0.000000e+00> : vector<32x128xf32>
    %115 = tpu.matmul %114, %113, %cst_101 {dimension_numbers = #tpu.dot_dimension_numbers<[1], [0], [0], [1], [0, 0, 1, 1], [], []>} : vector<32x32xf32>, vector<32x128xf32>, vector<32x128xf32> -> vector<32x128xf32>
    %c0_102 = arith.constant 0 : index
    %c0_103 = arith.constant 0 : index
    %116 = vector.load %arg27[%c0_102, %c0_103] : memref<32x1xf32, #tpu.memory_space<vmem>>, vector<32x1xf32>
    %117 = vector.broadcast %116 : vector<32x1xf32> to vector<32x128xf32>
    %118 = arith.addf %115, %117 : vector<32x128xf32>
    %cst_104 = arith.constant 0.000000e+00 : f32
    %119 = vector.broadcast %cst_104 : f32 to vector<32x128xf32>
    %120 = arith.maximumf %118, %119 : vector<32x128xf32>
    %c0_105 = arith.constant 0 : index
    %c0_106 = arith.constant 0 : index
    %121 = vector.load %arg28[%c0_105, %c0_106] : memref<32x1xf32, #tpu.memory_space<vmem>>, vector<32x1xf32>
    %122 = vector.broadcast %121 : vector<32x1xf32> to vector<32x128xf32>
    %123 = arith.mulf %122, %120 : vector<32x128xf32>
    %cst_107 = arith.constant dense<0.000000e+00> : vector<128xf32>
    %124 = vector.multi_reduction <add>, %123, %cst_107 [0] : vector<32x128xf32> to vector<128xf32>
    %125 = vector.shape_cast %124 : vector<128xf32> to vector<1x128xf32>
    %c0_108 = arith.constant 0 : index
    %c0_109 = arith.constant 0 : index
    %126 = vector.load %arg29[%c0_108, %c0_109] : memref<1x1xf32, #tpu.memory_space<vmem>>, vector<1x1xf32>
    %127 = vector.broadcast %126 : vector<1x1xf32> to vector<1x128xf32>
    %128 = arith.addf %125, %127 : vector<1x128xf32>
    %c0_110 = arith.constant 0 : index
    %c0_111 = arith.constant 0 : index
    %129 = vector.load %arg2[%c0_110, %c0_111] : memref<1x128xf32, #tpu.memory_space<vmem>>, vector<1x128xf32>
    %cst_112 = arith.constant 0.000000e+00 : f32
    %130 = vector.broadcast %cst_112 : f32 to vector<1x128xf32>
    %131 = arith.cmpf ogt, %129, %130 : vector<1x128xf32>
    %c0_113 = arith.constant 0 : index
    %c0_114 = arith.constant 0 : index
    %132 = vector.load %arg1[%c0_113, %c0_114] : memref<1x128xf32, #tpu.memory_space<vmem>>, vector<1x128xf32>
    %133 = math.sqrt %132 : vector<1x128xf32>
    %cst_115 = arith.constant 5.000000e-01 : f32
    %134 = vector.broadcast %cst_115 : f32 to vector<1x128xf32>
    %135 = arith.mulf %134, %133 : vector<1x128xf32>
    %136 = arith.select %131, %135, %128 : vector<1x128xi1>, vector<1x128xf32>
    %c0_116 = arith.constant 0 : index
    %c0_117 = arith.constant 0 : index
    %137 = vector.load %arg30[%c0_116, %c0_117] : memref<1x128xf32, #tpu.memory_space<vmem>>, vector<1x128xf32>
    tpu.vector_store %arg30[%c0_116, %c0_117], %136 {strides = array<i32>} : memref<1x128xf32, #tpu.memory_space<vmem>>, vector<1x128xf32>,
    return
  }
}

</mosaic_0001>

<llo_original>
// kernel: neural_pcg_forward.1
$region0: #{neural_pcg_forward.1}
  #allocation0 [shape = 'u32[]', space=smem, size = 0x4, offset = 0x4, fixed_abs, tag = 'smem constant byte address 0x4 - core index']
  #allocation1 [shape = 'u32[72,128]{1,0:T(1,128)}', space=vmem, size = 0x9000, scoped, tag = 'internal scratch']
  #allocation2 [shape = 'f32[1,1]{1,0:T(1,128)S(1)}', space=vmem, size = 0x200, scoped, tag = 'scoped memory for neural_pcg_forward.1']
  %s0 = inlined_call_operand.smem [shape: u32[31], index: -1, kind: input, shape index: {}]
  %s1 = sld [smem:[%s0]]
  %s2 = scalar_lea.smem %s0, 1
  %s3 = sld [smem:[%s2]]
  %s4 = scalar_lea.smem %s0, 2
  %s5 = sld [smem:[%s4]]
  %s6 = scalar_lea.smem %s0, 3
  %s7 = sld [smem:[%s6]]
  %s8 = scalar_lea.smem %s0, 4
  %s9 = sld [smem:[%s8]]
  %s10 = scalar_lea.smem %s0, 5
  %s11 = sld [smem:[%s10]]
  %s12 = scalar_lea.smem %s0, 6
  %s13 = sld [smem:[%s12]]
  %s14 = scalar_lea.smem %s0, 7
  %s15 = sld [smem:[%s14]]
  %s16 = scalar_lea.smem %s0, 8
  %s17 = sld [smem:[%s16]]
  %s18 = scalar_lea.smem %s0, 9
  %s19 = sld [smem:[%s18]]
  %s20 = scalar_lea.smem %s0, 10
  %s21 = sld [smem:[%s20]]
  %s22 = scalar_lea.smem %s0, 11
  %s23 = sld [smem:[%s22]]
  %s24 = scalar_lea.smem %s0, 12
  %s25 = sld [smem:[%s24]]
  %s26 = scalar_lea.smem %s0, 13
  %s27 = sld [smem:[%s26]]
  %s28 = scalar_lea.smem %s0, 14
  %s29 = sld [smem:[%s28]]
  %s30 = scalar_lea.smem %s0, 15
  %s31 = sld [smem:[%s30]]
  %s32 = scalar_lea.smem %s0, 16
  %s33 = sld [smem:[%s32]]
  %s34 = scalar_lea.smem %s0, 17
  %s35 = sld [smem:[%s34]]
  %s36 = scalar_lea.smem %s0, 18
  %s37 = sld [smem:[%s36]]
  %s38 = scalar_lea.smem %s0, 19
  %s39 = sld [smem:[%s38]]
  %s40 = scalar_lea.smem %s0, 20
  %s41 = sld [smem:[%s40]]
  %s42 = scalar_lea.smem %s0, 21
  %s43 = sld [smem:[%s42]]
  %s44 = scalar_lea.smem %s0, 22
  %s45 = sld [smem:[%s44]]
  %s46 = scalar_lea.smem %s0, 23
  %s47 = sld [smem:[%s46]]
  %s48 = scalar_lea.smem %s0, 24
  %s49 = sld [smem:[%s48]]
  %s50 = scalar_lea.smem %s0, 25
  %s51 = sld [smem:[%s50]]
  %s52 = scalar_lea.smem %s0, 26
  %s53 = sld [smem:[%s52]]
  %s54 = scalar_lea.smem %s0, 27
  %s55 = sld [smem:[%s54]]
  %s56 = scalar_lea.smem %s0, 28
  %s57 = sld [smem:[%s56]]
  %s58 = scalar_lea.smem %s0, 29
  %s59 = sld [smem:[%s58]]
  %s60 = scalar_lea.smem %s0, 30
  %s61 = sld [smem:[%s60]]
  %s62 = sld [smem:[#allocation0]]
  $region198: #{neural_pcg_forward.1} parent=0
    _
  %s64 = ssub.s32 1, %s62
  %s65 = scalar_select 0, %s64, %s62
  %v66 = vstv %s59
  %67 = vst [vmem:[#allocation2] sm:$0x1] %v66
  $region1: #{neural_pcg_forward.1} parent=0
    #allocation3 [shape = 'u8[16384]{0}', space=vmem, size = 0x4000, scoped, tag = 'input window, operand 7, single buffered']
    #allocation4 [shape = 's32[1]{0}', space=sflag, size = 0x4, scoped, tag = 'scoped memory for neural_pcg_forward.1']
    #allocation5 [shape = 'u8[16384]{0}', space=vmem, size = 0x4000, scoped, tag = 'input window, operand 8, single buffered']
    #allocation6 [shape = 's32[1]{0}', space=sflag, size = 0x4, scoped, tag = 'scoped memory for neural_pcg_forward.1']
    #allocation7 [shape = 'u8[16384]{0}', space=vmem, size = 0x4000, scoped, tag = 'input window, operand 9, single buffered']
    #allocation8 [shape = 'u8[16384]{0}', space=vmem, size = 0x4000, scoped, tag = 'input window, operand 10, single buffered']
    #allocation9 [shape = 's32[1]{0}', space=sflag, size = 0x4, scoped, tag = 'scoped memory for neural_pcg_forward.1']
    #allocation10 [shape = 'u8[16384]{0}', space=vmem, size = 0x4000, scoped, tag = 'input window, operand 11, single buffered']
    #allocation11 [shape = 'u8[16384]{0}', space=vmem, size = 0x4000, scoped, tag = 'input window, operand 12, single buffered']
    #allocation12 [shape = 's32[1]{0}', space=sflag, size = 0x4, scoped, tag = 'scoped memory for neural_pcg_forward.1']
    #allocation13 [shape = 'u8[16384]{0}', space=vmem, size = 0x4000, scoped, tag = 'input window, operand 13, single buffered']
    #allocation14 [shape = 'u8[16384]{0}', space=vmem, size = 0x4000, scoped, tag = 'input window, operand 14, single buffered']
    #allocation15 [shape = 's32[1]{0}', space=sflag, size = 0x4, scoped, tag = 'scoped memory for neural_pcg_forward.1']
    #allocation16 [shape = 'u8[32768]{0}', space=vmem, size = 0x8000, scoped, tag = 'input window, operand 15, single buffered']
    #allocation17 [shape = 'u8[32768]{0}', space=vmem, size = 0x8000, scoped, tag = 'input window, operand 16, single buffered']
    #allocation18 [shape = 's32[1]{0}', space=sflag, size = 0x4, scoped, tag = 'scoped memory for neural_pcg_forward.1']
    #allocation19 [shape = 'u8[32768]{0}', space=vmem, size = 0x8000, scoped, tag = 'input window, operand 17, single buffered']
    #allocation20 [shape = 'u8[32768]{0}', space=vmem, size = 0x8000, scoped, tag = 'input window, operand 18, single buffered']
    #allocation21 [shape = 's32[1]{0}', space=sflag, size = 0x4, scoped, tag = 'scoped memory for neural_pcg_forward.1']
    #allocation22 [shape = 'u8[32768]{0}', space=vmem, size = 0x8000, scoped, tag = 'input window, operand 19, single buffered']
    #allocation23 [shape = 'u8[32768]{0}', space=vmem, size = 0x8000, scoped, tag = 'input window, operand 20, single buffered']
    #allocation24 [shape = 's32[1]{0}', space=sflag, size = 0x4, scoped, tag = 'scoped memory for neural_pcg_forward.1']
    #allocation25 [shape = 'u8[32768]{0}', space=vmem, size = 0x8000, scoped, tag = 'input window, operand 21, single buffered']
    #allocation26 [shape = 'u8[32768]{0}', space=vmem, size = 0x8000, scoped, tag = 'input window, operand 22, single buffered']
    #allocation27 [shape = 's32[1]{0}', space=sflag, size = 0x4, scoped, tag = 'scoped memory for neural_pcg_forward.1']
    #allocation28 [shape = 'u8[16384]{0}', space=vmem, size = 0x4000, scoped, tag = 'input window, operand 28, single buffered']
    %68 = vsyncpa [#allocation4], 0
    %69 = vsyncpa [#allocation6], 0
    %70 = vsyncpa [#allocation9], 0
    %71 = vsyncpa [#allocation12], 0
    %72 = vsyncpa [#allocation15], 0
    %73 = vsyncpa [#allocation18], 0
    %74 = vsyncpa [#allocation21], 0
    %75 = vsyncpa [#allocation24], 0
    %76 = vsyncpa [#allocation27], 0
    // Predicated region
    $region2: #{neural_pcg_forward.1} parent=1 // pred_check
      _
    $region3: #{neural_pcg_forward.1} parent=1 // pred_check_branch
      %78 = sbr.rel (0) target = $region5
    $region4: #{neural_pcg_forward.1} parent=1 // pred_region
      _
    $region5: #{neural_pcg_forward.1} parent=1 // pred_fallthru
      _
    // Predicated region
    $region6: #{neural_pcg_forward.1} parent=1 // pred_check
      _
    $region7: #{neural_pcg_forward.1} parent=1 // pred_check_branch
      %80 = sbr.rel (0) target = $region9
    $region8: #{neural_pcg_forward.1} parent=1 // pred_region
      _
    $region9: #{neural_pcg_forward.1} parent=1 // pred_fallthru
      _
    // Predicated region
    $region10: #{neural_pcg_forward.1} parent=1 // pred_check
      _
    $region11: #{neural_pcg_forward.1} parent=1 // pred_check_branch
      %82 = sbr.rel (0) target = $region13
    $region12: #{neural_pcg_forward.1} parent=1 // pred_region
      _
    $region13: #{neural_pcg_forward.1} parent=1 // pred_fallthru
      _
    // Predicated region
    $region14: #{neural_pcg_forward.1} parent=1 // pred_check
      _
    $region15: #{neural_pcg_forward.1} parent=1 // pred_check_branch
      %84 = sbr.rel (0) target = $region17
    $region16: #{neural_pcg_forward.1} parent=1 // pred_region
      _
    $region17: #{neural_pcg_forward.1} parent=1 // pred_fallthru
      _
    // Predicated region
    $region18: #{neural_pcg_forward.1} parent=1 // pred_check
      _
    $region19: #{neural_pcg_forward.1} parent=1 // pred_check_branch
      %86 = sbr.rel (0) target = $region21
    $region20: #{neural_pcg_forward.1} parent=1 // pred_region
      _
    $region21: #{neural_pcg_forward.1} parent=1 // pred_fallthru
      _
    // Predicated region
    $region22: #{neural_pcg_forward.1} parent=1 // pred_check
      _
    $region23: #{neural_pcg_forward.1} parent=1 // pred_check_branch
      %88 = sbr.rel (0) target = $region25
    $region24: #{neural_pcg_forward.1} parent=1 // pred_region
      _
    $region25: #{neural_pcg_forward.1} parent=1 // pred_fallthru
      _
    // Predicated region
    $region26: #{neural_pcg_forward.1} parent=1 // pred_check
      _
    $region27: #{neural_pcg_forward.1} parent=1 // pred_check_branch
      %90 = sbr.rel (0) target = $region29
    $region28: #{neural_pcg_forward.1} parent=1 // pred_region
      _
    $region29: #{neural_pcg_forward.1} parent=1 // pred_fallthru
      _
    // Predicated region
    $region30: #{neural_pcg_forward.1} parent=1 // pred_check
      _
    $region31: #{neural_pcg_forward.1} parent=1 // pred_check_branch
      %92 = sbr.rel (0) target = $region33
    $region32: #{neural_pcg_forward.1} parent=1 // pred_region
      %94 = vsyncadd [#allocation4], 0
      %s95 = sshll.u32 %s15, 4
      %s96 = int_to_ptr.hbm [resolvable:$true] %s95
      %s97 = sshll.u32 [#allocation3], 4
      %s98 = int_to_ptr.vmem [resolvable:$true] %s97
      %103 = dma.hbm_to_vmem [thread:$0]  %s96, 512, %s98, [#allocation4], 128, 128, 8
    $region33: #{neural_pcg_forward.1} parent=1 // pred_fallthru
      _
    // Predicated region
    $region34: #{neural_pcg_forward.1} parent=1 // pred_check
      _
    $region35: #{neural_pcg_forward.1} parent=1 // pred_check_branch
      %105 = sbr.rel (0) target = $region37
    $region36: #{neural_pcg_forward.1} parent=1 // pred_region
      %107 = vsyncadd [#allocation6], 0
      %s108 = sshll.u32 %s17, 4
      %s109 = int_to_ptr.hbm [resolvable:$true] %s108
      %s110 = sshll.u32 [#allocation5], 4
      %s111 = int_to_ptr.vmem [resolvable:$true] %s110
      %116 = dma.hbm_to_vmem [thread:$0]  %s109, 512, %s111, [#allocation6], 128, 128, 8
    $region37: #{neural_pcg_forward.1} parent=1 // pred_fallthru
      _
    // Predicated region
    $region38: #{neural_pcg_forward.1} parent=1 // pred_check
      _
    $region39: #{neural_pcg_forward.1} parent=1 // pred_check_branch
      %118 = sbr.rel (0) target = $region41
    $region40: #{neural_pcg_forward.1} parent=1 // pred_region
      %120 = vsyncadd [#allocation6], 0
      %s121 = sshll.u32 %s19, 4
      %s122 = int_to_ptr.hbm [resolvable:$true] %s121
      %s123 = sshll.u32 [#allocation7], 4
      %s124 = int_to_ptr.vmem [resolvable:$true] %s123
      %129 = dma.hbm_to_vmem [thread:$0]  %s122, 512, %s124, [#allocation6], 128, 128, 8
    $region41: #{neural_pcg_forward.1} parent=1 // pred_fallthru
      _
    // Predicated region
    $region42: #{neural_pcg_forward.1} parent=1 // pred_check
      _
    $region43: #{neural_pcg_forward.1} parent=1 // pred_check_branch
      %131 = sbr.rel (0) target = $region45
    $region44: #{neural_pcg_forward.1} parent=1 // pred_region
      %133 = vsyncadd [#allocation9], 0
      %s134 = sshll.u32 %s21, 4
      %s135 = int_to_ptr.hbm [resolvable:$true] %s134
      %s136 = sshll.u32 [#allocation8], 4
      %s137 = int_to_ptr.vmem [resolvable:$true] %s136
      %142 = dma.hbm_to_vmem [thread:$0]  %s135, 512, %s137, [#allocation9], 128, 128, 8
    $region45: #{neural_pcg_forward.1} parent=1 // pred_fallthru
      _
    // Predicated region
    $region46: #{neural_pcg_forward.1} parent=1 // pred_check
      _
    $region47: #{neural_pcg_forward.1} parent=1 // pred_check_branch
      %144 = sbr.rel (0) target = $region49
    $region48: #{neural_pcg_forward.1} parent=1 // pred_region
      %146 = vsyncadd [#allocation9], 0
      %s147 = sshll.u32 %s23, 4
      %s148 = int_to_ptr.hbm [resolvable:$true] %s147
      %s149 = sshll.u32 [#allocation10], 4
      %s150 = int_to_ptr.vmem [resolvable:$true] %s149
      %155 = dma.hbm_to_vmem [thread:$0]  %s148, 512, %s150, [#allocation9], 128, 128, 8
    $region49: #{neural_pcg_forward.1} parent=1 // pred_fallthru
      _
    // Predicated region
    $region50: #{neural_pcg_forward.1} parent=1 // pred_check
      _
    $region51: #{neural_pcg_forward.1} parent=1 // pred_check_branch
      %157 = sbr.rel (0) target = $region53
    $region52: #{neural_pcg_forward.1} parent=1 // pred_region
      %159 = vsyncadd [#allocation12], 0
      %s160 = sshll.u32 %s25, 4
      %s161 = int_to_ptr.hbm [resolvable:$true] %s160
      %s162 = sshll.u32 [#allocation11], 4
      %s163 = int_to_ptr.vmem [resolvable:$true] %s162
      %168 = dma.hbm_to_vmem [thread:$0]  %s161, 512, %s163, [#allocation12], 128, 128, 8
    $region53: #{neural_pcg_forward.1} parent=1 // pred_fallthru
      _
    // Predicated region
    $region54: #{neural_pcg_forward.1} parent=1 // pred_check
      _
    $region55: #{neural_pcg_forward.1} parent=1 // pred_check_branch
      %170 = sbr.rel (0) target = $region57
    $region56: #{neural_pcg_forward.1} parent=1 // pred_region
      %172 = vsyncadd [#allocation12], 0
      %s173 = sshll.u32 %s27, 4
      %s174 = int_to_ptr.hbm [resolvable:$true] %s173
      %s175 = sshll.u32 [#allocation13], 4
      %s176 = int_to_ptr.vmem [resolvable:$true] %s175
      %181 = dma.hbm_to_vmem [thread:$0]  %s174, 512, %s176, [#allocation12], 128, 128, 8
    $region57: #{neural_pcg_forward.1} parent=1 // pred_fallthru
      _
    // Predicated region
    $region58: #{neural_pcg_forward.1} parent=1 // pred_check
      _
    $region59: #{neural_pcg_forward.1} parent=1 // pred_check_branch
      %183 = sbr.rel (0) target = $region61
    $region60: #{neural_pcg_forward.1} parent=1 // pred_region
      %185 = vsyncadd [#allocation15], 0
      %s186 = sshll.u32 %s29, 4
      %s187 = int_to_ptr.hbm [resolvable:$true] %s186
      %s188 = sshll.u32 [#allocation14], 4
      %s189 = int_to_ptr.vmem [resolvable:$true] %s188
      %194 = dma.hbm_to_vmem [thread:$0]  %s187, 512, %s189, [#allocation15], 128, 128, 8
    $region61: #{neural_pcg_forward.1} parent=1 // pred_fallthru
      _
    // Predicated region
    $region62: #{neural_pcg_forward.1} parent=1 // pred_check
      _
    $region63: #{neural_pcg_forward.1} parent=1 // pred_check_branch
      %196 = sbr.rel (0) target = $region65
    $region64: #{neural_pcg_forward.1} parent=1 // pred_region
      %198 = vsyncadd [#allocation15], 0
      %s199 = sshll.u32 %s31, 4
      %s200 = int_to_ptr.hbm [resolvable:$true] %s199
      %s201 = sshll.u32 [#allocation16], 4
      %s202 = int_to_ptr.vmem [resolvable:$true] %s201
      %207 = dma.hbm_to_vmem [thread:$0]  %s200, 1024, %s202, [#allocation15], 128, 128, 8
    $region65: #{neural_pcg_forward.1} parent=1 // pred_fallthru
      _
    // Predicated region
    $region66: #{neural_pcg_forward.1} parent=1 // pred_check
      _
    $region67: #{neural_pcg_forward.1} parent=1 // pred_check_branch
      %209 = sbr.rel (0) target = $region69
    $region68: #{neural_pcg_forward.1} parent=1 // pred_region
      %211 = vsyncadd [#allocation18], 0
      %s212 = sshll.u32 %s33, 4
      %s213 = int_to_ptr.hbm [resolvable:$true] %s212
      %s214 = sshll.u32 [#allocation17], 4
      %s215 = int_to_ptr.vmem [resolvable:$true] %s214
      %220 = dma.hbm_to_vmem [thread:$0]  %s213, 1024, %s215, [#allocation18], 128, 128, 8
    $region69: #{neural_pcg_forward.1} parent=1 // pred_fallthru
      _
    // Predicated region
    $region70: #{neural_pcg_forward.1} parent=1 // pred_check
      _
    $region71: #{neural_pcg_forward.1} parent=1 // pred_check_branch
      %222 = sbr.rel (0) target = $region73
    $region72: #{neural_pcg_forward.1} parent=1 // pred_region
      %224 = vsyncadd [#allocation18], 0
      %s225 = sshll.u32 %s35, 4
      %s226 = int_to_ptr.hbm [resolvable:$true] %s225
      %s227 = sshll.u32 [#allocation19], 4
      %s228 = int_to_ptr.vmem [resolvable:$true] %s227
      %233 = dma.hbm_to_vmem [thread:$0]  %s226, 1024, %s228, [#allocation18], 128, 128, 8
    $region73: #{neural_pcg_forward.1} parent=1 // pred_fallthru
      _
    // Predicated region
    $region74: #{neural_pcg_forward.1} parent=1 // pred_check
      _
    $region75: #{neural_pcg_forward.1} parent=1 // pred_check_branch
      %235 = sbr.rel (0) target = $region77
    $region76: #{neural_pcg_forward.1} parent=1 // pred_region
      %237 = vsyncadd [#allocation21], 0
      %s238 = sshll.u32 %s37, 4
      %s239 = int_to_ptr.hbm [resolvable:$true] %s238
      %s240 = sshll.u32 [#allocation20], 4
      %s241 = int_to_ptr.vmem [resolvable:$true] %s240
      %246 = dma.hbm_to_vmem [thread:$0]  %s239, 1024, %s241, [#allocation21], 128, 128, 8
    $region77: #{neural_pcg_forward.1} parent=1 // pred_fallthru
      _
    // Predicated region
    $region78: #{neural_pcg_forward.1} parent=1 // pred_check
      _
    $region79: #{neural_pcg_forward.1} parent=1 // pred_check_branch
      %248 = sbr.rel (0) target = $region81
    $region80: #{neural_pcg_forward.1} parent=1 // pred_region
      %250 = vsyncadd [#allocation21], 0
      %s251 = sshll.u32 %s39, 4
      %s252 = int_to_ptr.hbm [resolvable:$true] %s251
      %s253 = sshll.u32 [#allocation22], 4
      %s254 = int_to_ptr.vmem [resolvable:$true] %s253
      %259 = dma.hbm_to_vmem [thread:$0]  %s252, 1024, %s254, [#allocation21], 128, 128, 8
    $region81: #{neural_pcg_forward.1} parent=1 // pred_fallthru
      _
    // Predicated region
    $region82: #{neural_pcg_forward.1} parent=1 // pred_check
      _
    $region83: #{neural_pcg_forward.1} parent=1 // pred_check_branch
      %261 = sbr.rel (0) target = $region85
    $region84: #{neural_pcg_forward.1} parent=1 // pred_region
      %263 = vsyncadd [#allocation24], 0
      %s264 = sshll.u32 %s41, 4
      %s265 = int_to_ptr.hbm [resolvable:$true] %s264
      %s266 = sshll.u32 [#allocation23], 4
      %s267 = int_to_ptr.vmem [resolvable:$true] %s266
      %272 = dma.hbm_to_vmem [thread:$0]  %s265, 1024, %s267, [#allocation24], 128, 128, 8
    $region85: #{neural_pcg_forward.1} parent=1 // pred_fallthru
      _
    // Predicated region
    $region86: #{neural_pcg_forward.1} parent=1 // pred_check
      _
    $region87: #{neural_pcg_forward.1} parent=1 // pred_check_branch
      %274 = sbr.rel (0) target = $region89
    $region88: #{neural_pcg_forward.1} parent=1 // pred_region
      %276 = vsyncadd [#allocation24], 0
      %s277 = sshll.u32 %s43, 4
      %s278 = int_to_ptr.hbm [resolvable:$true] %s277
      %s279 = sshll.u32 [#allocation25], 4
      %s280 = int_to_ptr.vmem [resolvable:$true] %s279
      %285 = dma.hbm_to_vmem [thread:$0]  %s278, 1024, %s280, [#allocation24], 128, 128, 8
    $region89: #{neural_pcg_forward.1} parent=1 // pred_fallthru
      _
    // Predicated region
    $region90: #{neural_pcg_forward.1} parent=1 // pred_check
      _
    $region91: #{neural_pcg_forward.1} parent=1 // pred_check_branch
      %287 = sbr.rel (0) target = $region93
    $region92: #{neural_pcg_forward.1} parent=1 // pred_region
      %289 = vsyncadd [#allocation27], 0
      %s290 = sshll.u32 %s45, 4
      %s291 = int_to_ptr.hbm [resolvable:$true] %s290
      %s292 = sshll.u32 [#allocation26], 4
      %s293 = int_to_ptr.vmem [resolvable:$true] %s292
      %298 = dma.hbm_to_vmem [thread:$0]  %s291, 1024, %s293, [#allocation27], 128, 128, 8
    $region93: #{neural_pcg_forward.1} parent=1 // pred_fallthru
      _
    // Predicated region
    $region94: #{neural_pcg_forward.1} parent=1 // pred_check
      _
    $region95: #{neural_pcg_forward.1} parent=1 // pred_check_branch
      %300 = sbr.rel (0) target = $region97
    $region96: #{neural_pcg_forward.1} parent=1 // pred_region
      _
    $region97: #{neural_pcg_forward.1} parent=1 // pred_fallthru
      _
    // Predicated region
    $region98: #{neural_pcg_forward.1} parent=1 // pred_check
      _
    $region99: #{neural_pcg_forward.1} parent=1 // pred_check_branch
      %302 = sbr.rel (0) target = $region101
    $region100: #{neural_pcg_forward.1} parent=1 // pred_region
      _
    $region101: #{neural_pcg_forward.1} parent=1 // pred_fallthru
      _
    // Predicated region
    $region102: #{neural_pcg_forward.1} parent=1 // pred_check
      _
    $region103: #{neural_pcg_forward.1} parent=1 // pred_check_branch
      %304 = sbr.rel (0) target = $region105
    $region104: #{neural_pcg_forward.1} parent=1 // pred_region
      _
    $region105: #{neural_pcg_forward.1} parent=1 // pred_fallthru
      _
    // Predicated region
    $region106: #{neural_pcg_forward.1} parent=1 // pred_check
      _
    $region107: #{neural_pcg_forward.1} parent=1 // pred_check_branch
      %306 = sbr.rel (0) target = $region109
    $region108: #{neural_pcg_forward.1} parent=1 // pred_region
      _
    $region109: #{neural_pcg_forward.1} parent=1 // pred_fallthru
      _
    // Predicated region
    $region110: #{neural_pcg_forward.1} parent=1 // pred_check
      _
    $region111: #{neural_pcg_forward.1} parent=1 // pred_check_branch
      %308 = sbr.rel (0) target = $region113
    $region112: #{neural_pcg_forward.1} parent=1 // pred_region
      _
    $region113: #{neural_pcg_forward.1} parent=1 // pred_fallthru
      _
    // Predicated region
    $region114: #{neural_pcg_forward.1} parent=1 // pred_check
      _
    $region115: #{neural_pcg_forward.1} parent=1 // pred_check_branch
      %310 = sbr.rel (0) target = $region117
    $region116: #{neural_pcg_forward.1} parent=1 // pred_region
      %312 = vsyncadd [#allocation27], 0
      %s313 = sshll.u32 %s57, 4
      %s314 = int_to_ptr.hbm [resolvable:$true] %s313
      %s315 = sshll.u32 [#allocation28], 4
      %s316 = int_to_ptr.vmem [resolvable:$true] %s315
      %321 = dma.hbm_to_vmem [thread:$0]  %s314, 512, %s316, [#allocation27], 128, 128, 8
    $region117: #{neural_pcg_forward.1} parent=1 // pred_fallthru
      _
    // Predicated region
    $region118: #{neural_pcg_forward.1} parent=1 // pred_check
      _
    $region119: #{neural_pcg_forward.1} parent=1 // pred_check_branch
      %323 = sbr.rel (0) target = $region121
    $region120: #{neural_pcg_forward.1} parent=1 // pred_region
      _
    $region121: #{neural_pcg_forward.1} parent=1 // pred_fallthru
      _
    // Predicated region
    $region122: #{neural_pcg_forward.1} parent=1 // pred_check
      _
    $region123: #{neural_pcg_forward.1} parent=1 // pred_check_branch
      %325 = sbr.rel (0) target = $region125
    $region124: #{neural_pcg_forward.1} parent=1 // pred_region
      %327 = dma.done [#allocation4], 512
    $region125: #{neural_pcg_forward.1} parent=1 // pred_fallthru
      _
    // Predicated region
    $region126: #{neural_pcg_forward.1} parent=1 // pred_check
      _
    $region127: #{neural_pcg_forward.1} parent=1 // pred_check_branch
      %329 = sbr.rel (0) target = $region129
    $region128: #{neural_pcg_forward.1} parent=1 // pred_region
      %331 = dma.done [#allocation6], 512
    $region129: #{neural_pcg_forward.1} parent=1 // pred_fallthru
      _
    // Predicated region
    $region130: #{neural_pcg_forward.1} parent=1 // pred_check
      _
    $region131: #{neural_pcg_forward.1} parent=1 // pred_check_branch
      %333 = sbr.rel (0) target = $region133
    $region132: #{neural_pcg_forward.1} parent=1 // pred_region
      %335 = dma.done [#allocation6], 512
    $region133: #{neural_pcg_forward.1} parent=1 // pred_fallthru
      _
    // Predicated region
    $region134: #{neural_pcg_forward.1} parent=1 // pred_check
      _
    $region135: #{neural_pcg_forward.1} parent=1 // pred_check_branch
      %337 = sbr.rel (0) target = $region137
    $region136: #{neural_pcg_forward.1} parent=1 // pred_region
      %339 = dma.done [#allocation9], 512
    $region137: #{neural_pcg_forward.1} parent=1 // pred_fallthru
      _
    // Predicated region
    $region138: #{neural_pcg_forward.1} parent=1 // pred_check
      _
    $region139: #{neural_pcg_forward.1} parent=1 // pred_check_branch
      %341 = sbr.rel (0) target = $region141
    $region140: #{neural_pcg_forward.1} parent=1 // pred_region
      %343 = dma.done [#allocation9], 512
    $region141: #{neural_pcg_forward.1} parent=1 // pred_fallthru
      _
    // Predicated region
    $region142: #{neural_pcg_forward.1} parent=1 // pred_check
      _
    $region143: #{neural_pcg_forward.1} parent=1 // pred_check_branch
      %345 = sbr.rel (0) target = $region145
    $region144: #{neural_pcg_forward.1} parent=1 // pred_region
      %347 = dma.done [#allocation12], 512
    $region145: #{neural_pcg_forward.1} parent=1 // pred_fallthru
      _
    // Predicated region
    $region146: #{neural_pcg_forward.1} parent=1 // pred_check
      _
    $region147: #{neural_pcg_forward.1} parent=1 // pred_check_branch
      %349 = sbr.rel (0) target = $region149
    $region148: #{neural_pcg_forward.1} parent=1 // pred_region
      %351 = dma.done [#allocation12], 512
    $region149: #{neural_pcg_forward.1} parent=1 // pred_fallthru
      _
    // Predicated region
    $region150: #{neural_pcg_forward.1} parent=1 // pred_check
      _
    $region151: #{neural_pcg_forward.1} parent=1 // pred_check_branch
      %353 = sbr.rel (0) target = $region153
    $region152: #{neural_pcg_forward.1} parent=1 // pred_region
      %355 = dma.done [#allocation15], 512
    $region153: #{neural_pcg_forward.1} parent=1 // pred_fallthru
      _
    // Predicated region
    $region154: #{neural_pcg_forward.1} parent=1 // pred_check
      _
    $region155: #{neural_pcg_forward.1} parent=1 // pred_check_branch
      %357 = sbr.rel (0) target = $region157
    $region156: #{neural_pcg_forward.1} parent=1 // pred_region
      %359 = dma.done [#allocation15], 1024
    $region157: #{neural_pcg_forward.1} parent=1 // pred_fallthru
      _
    // Predicated region
    $region158: #{neural_pcg_forward.1} parent=1 // pred_check
      _
    $region159: #{neural_pcg_forward.1} parent=1 // pred_check_branch
      %361 = sbr.rel (0) target = $region161
    $region160: #{neural_pcg_forward.1} parent=1 // pred_region
      %363 = dma.done [#allocation18], 1024
    $region161: #{neural_pcg_forward.1} parent=1 // pred_fallthru
      _
    // Predicated region
    $region162: #{neural_pcg_forward.1} parent=1 // pred_check
      _
    $region163: #{neural_pcg_forward.1} parent=1 // pred_check_branch
      %365 = sbr.rel (0) target = $region165
    $region164: #{neural_pcg_forward.1} parent=1 // pred_region
      %367 = dma.done [#allocation18], 1024
    $region165: #{neural_pcg_forward.1} parent=1 // pred_fallthru
      _
    // Predicated region
    $region166: #{neural_pcg_forward.1} parent=1 // pred_check
      _
    $region167: #{neural_pcg_forward.1} parent=1 // pred_check_branch
      %369 = sbr.rel (0) target = $region169
    $region168: #{neural_pcg_forward.1} parent=1 // pred_region
      %371 = dma.done [#allocation21], 1024
    $region169: #{neural_pcg_forward.1} parent=1 // pred_fallthru
      _
    // Predicated region
    $region170: #{neural_pcg_forward.1} parent=1 // pred_check
      _
    $region171: #{neural_pcg_forward.1} parent=1 // pred_check_branch
      %373 = sbr.rel (0) target = $region173
    $region172: #{neural_pcg_forward.1} parent=1 // pred_region
      %375 = dma.done [#allocation21], 1024
    $region173: #{neural_pcg_forward.1} parent=1 // pred_fallthru
      _
    // Predicated region
    $region174: #{neural_pcg_forward.1} parent=1 // pred_check
      _
    $region175: #{neural_pcg_forward.1} parent=1 // pred_check_branch
      %377 = sbr.rel (0) target = $region177
    $region176: #{neural_pcg_forward.1} parent=1 // pred_region
      %379 = dma.done [#allocation24], 1024
    $region177: #{neural_pcg_forward.1} parent=1 // pred_fallthru
      _
    // Predicated region
    $region178: #{neural_pcg_forward.1} parent=1 // pred_check
      _
    $region179: #{neural_pcg_forward.1} parent=1 // pred_check_branch
      %381 = sbr.rel (0) target = $region181
    $region180: #{neural_pcg_forward.1} parent=1 // pred_region
      %383 = dma.done [#allocation24], 1024
    $region181: #{neural_pcg_forward.1} parent=1 // pred_fallthru
      _
    // Predicated region
    $region182: #{neural_pcg_forward.1} parent=1 // pred_check
      _
    $region183: #{neural_pcg_forward.1} parent=1 // pred_check_branch
      %385 = sbr.rel (0) target = $region185
    $region184: #{neural_pcg_forward.1} parent=1 // pred_region
      %387 = dma.done [#allocation27], 1024
    $region185: #{neural_pcg_forward.1} parent=1 // pred_fallthru
      _
    // Predicated region
    $region186: #{neural_pcg_forward.1} parent=1 // pred_check
      _
    $region187: #{neural_pcg_forward.1} parent=1 // pred_check_branch
      %389 = sbr.rel (0) target = $region189
    $region188: #{neural_pcg_forward.1} parent=1 // pred_region
      %391 = dma.done [#allocation27], 512
    $region189: #{neural_pcg_forward.1} parent=1 // pred_fallthru
      _
    %v392 = vld [vmem:[%s7] sm:$0xf]
    %v393 = vld [vmem:[%s7 + $0x4] sm:$0xf]
    %v394 = vld [vmem:[%s7 + $0x8] sm:$0xf]
    %v395 = vld [vmem:[%s7 + $0xc] sm:$0xf]
    %v396 = vld [vmem:[%s7 + $0x10] sm:$0xf]
    %v397 = vld [vmem:[%s7 + $0x14] sm:$0xf]
    %v398 = vld [vmem:[%s7 + $0x18] sm:$0xf]
    %v399 = vld [vmem:[%s7 + $0x1c] sm:$0xf]
    %v400 = vld [vmem:[%s7 + $0x20] sm:$0xf]
    %v401 = vld [vmem:[%s7 + $0x24] sm:$0xf]
    %v402 = vld [vmem:[%s7 + $0x28] sm:$0xf]
    %v403 = vld [vmem:[%s7 + $0x2c] sm:$0xf]
    %v404 = vld [vmem:[%s7 + $0x30] sm:$0xf]
    %v405 = vld [vmem:[%s7 + $0x34] sm:$0xf]
    %v406 = vld [vmem:[%s7 + $0x38] sm:$0xf]
    %v407 = vld [vmem:[%s7 + $0x3c] sm:$0xf]
    %v408 = vld [vmem:[%s9] sm:$0xf]
    %v409 = vld [vmem:[%s9 + $0x4] sm:$0xf]
    %v410 = vld [vmem:[%s9 + $0x8] sm:$0xf]
    %v411 = vld [vmem:[%s9 + $0xc] sm:$0xf]
    %v412 = vld [vmem:[%s9 + $0x10] sm:$0xf]
    %v413 = vld [vmem:[%s9 + $0x14] sm:$0xf]
    %v414 = vld [vmem:[%s9 + $0x18] sm:$0xf]
    %v415 = vld [vmem:[%s9 + $0x1c] sm:$0xf]
    %v416 = vld [vmem:[%s9 + $0x20] sm:$0xf]
    %v417 = vld [vmem:[%s9 + $0x24] sm:$0xf]
    %v418 = vld [vmem:[%s9 + $0x28] sm:$0xf]
    %v419 = vld [vmem:[%s9 + $0x2c] sm:$0xf]
    %v420 = vld [vmem:[%s9 + $0x30] sm:$0xf]
    %v421 = vld [vmem:[%s9 + $0x34] sm:$0xf]
    %v422 = vld [vmem:[%s9 + $0x38] sm:$0xf]
    %v423 = vld [vmem:[%s9 + $0x3c] sm:$0xf]
    %v424 = vld [vmem:[%s11] sm:$0xf]
    %v425 = vld [vmem:[%s11 + $0x4] sm:$0xf]
    %v426 = vld [vmem:[%s11 + $0x8] sm:$0xf]
    %v427 = vld [vmem:[%s11 + $0xc] sm:$0xf]
    %v428 = vld [vmem:[%s11 + $0x10] sm:$0xf]
    %v429 = vld [vmem:[%s11 + $0x14] sm:$0xf]
    %v430 = vld [vmem:[%s11 + $0x18] sm:$0xf]
    %v431 = vld [vmem:[%s11 + $0x1c] sm:$0xf]
    %v432 = vld [vmem:[%s11 + $0x20] sm:$0xf]
    %v433 = vld [vmem:[%s11 + $0x24] sm:$0xf]
    %v434 = vld [vmem:[%s11 + $0x28] sm:$0xf]
    %v435 = vld [vmem:[%s11 + $0x2c] sm:$0xf]
    %v436 = vld [vmem:[%s11 + $0x30] sm:$0xf]
    %v437 = vld [vmem:[%s11 + $0x34] sm:$0xf]
    %v438 = vld [vmem:[%s11 + $0x38] sm:$0xf]
    %v439 = vld [vmem:[%s11 + $0x3c] sm:$0xf]
    %v440 = vld [vmem:[%s13] sm:$0x1]
    %v441 = vld [vmem:[#allocation3] sm:$0xff]
    %v442 = vld [vmem:[#allocation3 + $0x8] sm:$0xff]
    %v443 = vld [vmem:[#allocation3 + $0x10] sm:$0xff]
    %v444 = vld [vmem:[#allocation3 + $0x18] sm:$0xff]
    %v445 = vld [vmem:[%s1] sm:$0x1]
    %447 = vset.pattern.permute.xlu0 0
    %448 = vperm.xlu0 %447, %v441
    %v449 = vpop.permute.xlu0 %448
    %452 = vset.pattern.permute.xlu0 0
    %453 = vperm.xlu0 %452, %v442
    %v454 = vpop.permute.xlu0 %453
    %457 = vset.pattern.permute.xlu0 0
    %458 = vperm.xlu0 %457, %v443
    %v459 = vpop.permute.xlu0 %458
    %462 = vset.pattern.permute.xlu0 0
    %463 = vperm.xlu0 %462, %v444
    %v464 = vpop.permute.xlu0 %463
    %v467 = vperm.slane %v445, 0
    %v469 = vmul.f32 %v449, %v467
    %v470 = vmul.f32 %v454, %v467
    %v471 = vmul.f32 %v459, %v467
    %v472 = vmul.f32 %v464, %v467
    %v473 = vld [vmem:[#allocation5] sm:$0xff]
    %v474 = vld [vmem:[#allocation5 + $0x8] sm:$0xff]
    %v475 = vld [vmem:[#allocation5 + $0x10] sm:$0xff]
    %v476 = vld [vmem:[#allocation5 + $0x18] sm:$0xff]
    %478 = vset.pattern.permute.xlu0 0
    %479 = vperm.xlu0 %478, %v473
    %v480 = vpop.permute.xlu0 %479
    %483 = vset.pattern.permute.xlu0 0
    %484 = vperm.xlu0 %483, %v474
    %v485 = vpop.permute.xlu0 %484
    %488 = vset.pattern.permute.xlu0 0
    %489 = vperm.xlu0 %488, %v475
    %v490 = vpop.permute.xlu0 %489
    %493 = vset.pattern.permute.xlu0 0
    %494 = vperm.xlu0 %493, %v476
    %v495 = vpop.permute.xlu0 %494
    %v497 = vadd.f32 %v469, %v480
    %v498 = vadd.f32 %v470, %v485
    %v499 = vadd.f32 %v471, %v490
    %v500 = vadd.f32 %v472, %v495
    %v501 = vmax.f32 %v497, 0.0
    %v502 = vmax.f32 %v498, 0.0
    %v503 = vmax.f32 %v499, 0.0
    %v504 = vmax.f32 %v500, 0.0
    %v505 = vld [vmem:[#allocation7] sm:$0xff]
    %v506 = vld [vmem:[#allocation7 + $0x8] sm:$0xff]
    %v507 = vld [vmem:[#allocation7 + $0x10] sm:$0xff]
    %v508 = vld [vmem:[#allocation7 + $0x18] sm:$0xff]
    %v509 = vld [vmem:[#allocation8] sm:$0xff]
    %v510 = vld [vmem:[#allocation8 + $0x8] sm:$0xff]
    %v511 = vld [vmem:[#allocation8 + $0x10] sm:$0xff]
    %v512 = vld [vmem:[#allocation8 + $0x18] sm:$0xff]
    %514 = vset.pattern.permute.xlu0 0
    %515 = vperm.xlu0 %514, %v509
    %v516 = vpop.permute.xlu0 %515
    %519 = vset.pattern.permute.xlu0 0
    %520 = vperm.xlu0 %519, %v510
    %v521 = vpop.permute.xlu0 %520
    %524 = vset.pattern.permute.xlu0 0
    %525 = vperm.xlu0 %524, %v511
    %v526 = vpop.permute.xlu0 %525
    %529 = vset.pattern.permute.xlu0 0
    %530 = vperm.xlu0 %529, %v512
    %v531 = vpop.permute.xlu0 %530
    %vm533 = vcmask 261120
    %v535 = vsel %vm533, %v505, 0
    %v538 = vsel %vm533, %v506, 0
    %v541 = vsel %vm533, %v507, 0
    %v544 = vsel %vm533, %v508, 0
    %546 = vmatpush.msra.mxu0 0.0
    %547 = vmatpush.msra.mxu0 0.0
    %548 = vmatpush.msra.mxu0 0.0
    %549 = vmatpush.msra.mxu0 0.0
    %550 = vmatpush.msra.mxu0 0.0
    %551 = vmatpush.msra.mxu0 0.0
    %552 = vmatpush.msra.mxu0 0.0
    %553 = vmatpush.msra.mxu0 0.0
    %554 = vmatpush.msra.mxu0 0.0
    %555 = vmatpush.msra.mxu0 0.0
    %556 = vmatpush.msra.mxu0 0.0
    %557 = vmatpush.msra.mxu0 0.0
    %558 = vmatpush.msra.mxu0 %v504
    %559 = vmatpush.msra.mxu0 %v503
    %560 = vmatpush.msra.mxu0 %v502
    %561 = vmatpush.msra.mxu0 %v501
    %562 = vmatmul.f32.gmra.mxu0 %v535
    %v563 = vpop.f32.mrf.mxu0
    %v564 = vadd.f32 %v516, %v563
    %565 = vmatmul.f32.gmra.mxu0 %v538
    %v566 = vpop.f32.mrf.mxu0
    %v567 = vadd.f32 %v521, %v566
    %568 = vmatmul.f32.gmra.mxu0 %v541
    %v569 = vpop.f32.mrf.mxu0
    %v570 = vadd.f32 %v526, %v569
    %571 = vmatmul.f32.gmra.mxu0 %v544
    %v572 = vpop.f32.mrf.mxu0
    %v573 = vadd.f32 %v531, %v572
    %574 = vdwg.mxu0
    %v575 = vld [vmem:[#allocation10] sm:$0xff]
    %v576 = vld [vmem:[#allocation10 + $0x8] sm:$0xff]
    %v577 = vld [vmem:[#allocation10 + $0x10] sm:$0xff]
    %v578 = vld [vmem:[#allocation10 + $0x18] sm:$0xff]
    %v579 = vld [vmem:[%s3] sm:$0x1]
    %581 = vset.pattern.permute.xlu0 0
    %582 = vperm.xlu0 %581, %v575
    %v583 = vpop.permute.xlu0 %582
    %586 = vset.pattern.permute.xlu0 0
    %587 = vperm.xlu0 %586, %v576
    %v588 = vpop.permute.xlu0 %587
    %591 = vset.pattern.permute.xlu0 0
    %592 = vperm.xlu0 %591, %v577
    %v593 = vpop.permute.xlu0 %592
    %596 = vset.pattern.permute.xlu0 0
    %597 = vperm.xlu0 %596, %v578
    %v598 = vpop.permute.xlu0 %597
    %v601 = vperm.slane %v579, 0
    %v603 = vmul.f32 %v583, %v601
    %v604 = vmul.f32 %v588, %v601
    %v605 = vmul.f32 %v593, %v601
    %v606 = vmul.f32 %v598, %v601
    %v607 = vld [vmem:[#allocation11] sm:$0xff]
    %v608 = vld [vmem:[#allocation11 + $0x8] sm:$0xff]
    %v609 = vld [vmem:[#allocation11 + $0x10] sm:$0xff]
    %v610 = vld [vmem:[#allocation11 + $0x18] sm:$0xff]
    %612 = vset.pattern.permute.xlu0 0
    %613 = vperm.xlu0 %612, %v607
    %v614 = vpop.permute.xlu0 %613
    %617 = vset.pattern.permute.xlu0 0
    %618 = vperm.xlu0 %617, %v608
    %v619 = vpop.permute.xlu0 %618
    %622 = vset.pattern.permute.xlu0 0
    %623 = vperm.xlu0 %622, %v609
    %v624 = vpop.permute.xlu0 %623
    %627 = vset.pattern.permute.xlu0 0
    %628 = vperm.xlu0 %627, %v610
    %v629 = vpop.permute.xlu0 %628
    %v631 = vadd.f32 %v603, %v614
    %v632 = vadd.f32 %v604, %v619
    %v633 = vadd.f32 %v605, %v624
    %v634 = vadd.f32 %v606, %v629
    %v635 = vmax.f32 %v631, 0.0
    %v636 = vmax.f32 %v632, 0.0
    %v637 = vmax.f32 %v633, 0.0
    %v638 = vmax.f32 %v634, 0.0
    %v639 = vld [vmem:[#allocation13] sm:$0xff]
    %v640 = vld [vmem:[#allocation13 + $0x8] sm:$0xff]
    %v641 = vld [vmem:[#allocation13 + $0x10] sm:$0xff]
    %v642 = vld [vmem:[#allocation13 + $0x18] sm:$0xff]
    %v643 = vld [vmem:[#allocation14] sm:$0xff]
    %v644 = vld [vmem:[#allocation14 + $0x8] sm:$0xff]
    %v645 = vld [vmem:[#allocation14 + $0x10] sm:$0xff]
    %v646 = vld [vmem:[#allocation14 + $0x18] sm:$0xff]
    %648 = vset.pattern.permute.xlu0 0
    %649 = vperm.xlu0 %648, %v643
    %v650 = vpop.permute.xlu0 %649
    %653 = vset.pattern.permute.xlu0 0
    %654 = vperm.xlu0 %653, %v644
    %v655 = vpop.permute.xlu0 %654
    %658 = vset.pattern.permute.xlu0 0
    %659 = vperm.xlu0 %658, %v645
    %v660 = vpop.permute.xlu0 %659
    %663 = vset.pattern.permute.xlu0 0
    %664 = vperm.xlu0 %663, %v646
    %v665 = vpop.permute.xlu0 %664
    %v668 = vsel %vm533, %v639, 0
    %v671 = vsel %vm533, %v640, 0
    %v674 = vsel %vm533, %v641, 0
    %v677 = vsel %vm533, %v642, 0
    %679 = vmatpush.msra.mxu0 0.0
    %680 = vmatpush.msra.mxu0 0.0
    %681 = vmatpush.msra.mxu0 0.0
    %682 = vmatpush.msra.mxu0 0.0
    %683 = vmatpush.msra.mxu0 0.0
    %684 = vmatpush.msra.mxu0 0.0
    %685 = vmatpush.msra.mxu0 0.0
    %686 = vmatpush.msra.mxu0 0.0
    %687 = vmatpush.msra.mxu0 0.0
    %688 = vmatpush.msra.mxu0 0.0
    %689 = vmatpush.msra.mxu0 0.0
    %690 = vmatpush.msra.mxu0 0.0
    %691 = vmatpush.msra.mxu0 %v638
    %692 = vmatpush.msra.mxu0 %v637
    %693 = vmatpush.msra.mxu0 %v636
    %694 = vmatpush.msra.mxu0 %v635
    %695 = vmatmul.f32.gmra.mxu0 %v668
    %v696 = vpop.f32.mrf.mxu0
    %v697 = vadd.f32 %v650, %v696
    %698 = vmatmul.f32.gmra.mxu0 %v671
    %v699 = vpop.f32.mrf.mxu0
    %v700 = vadd.f32 %v655, %v699
    %701 = vmatmul.f32.gmra.mxu0 %v674
    %v702 = vpop.f32.mrf.mxu0
    %v703 = vadd.f32 %v660, %v702
    %704 = vmatmul.f32.gmra.mxu0 %v677
    %v705 = vpop.f32.mrf.mxu0
    %v706 = vadd.f32 %v665, %v705
    %707 = vdwg.mxu0
    %v708 = vld [vmem:[#allocation16] sm:$0xff]
    %v709 = vld [vmem:[#allocation16 + $0x8] sm:$0xff]
    %v710 = vld [vmem:[#allocation16 + $0x10] sm:$0xff]
    %v711 = vld [vmem:[#allocation16 + $0x18] sm:$0xff]
    %v713 = vsel %vm533, %v708, 0
    %v716 = vsel %vm533, %v709, 0
    %v719 = vsel %vm533, %v710, 0
    %v722 = vsel %vm533, %v711, 0
    %724 = vmatpush.msra.mxu0 0.0
    %725 = vmatpush.msra.mxu0 0.0
    %726 = vmatpush.msra.mxu0 0.0
    %727 = vmatpush.msra.mxu0 0.0
    %728 = vmatpush.msra.mxu0 0.0
    %729 = vmatpush.msra.mxu0 0.0
    %730 = vmatpush.msra.mxu0 0.0
    %731 = vmatpush.msra.mxu0 0.0
    %732 = vmatpush.msra.mxu0 0.0
    %733 = vmatpush.msra.mxu0 0.0
    %734 = vmatpush.msra.mxu0 0.0
    %735 = vmatpush.msra.mxu0 0.0
    %736 = vmatpush.msra.mxu0 %v573
    %737 = vmatpush.msra.mxu0 %v570
    %738 = vmatpush.msra.mxu0 %v567
    %739 = vmatpush.msra.mxu0 %v564
    %740 = vmatmul.f32.gmra.mxu0 %v713
    %v741 = vpop.f32.mrf.mxu0
    %v742 = vadd.f32 0.0, %v741
    %743 = vmatmul.f32.gmra.mxu0 %v716
    %v744 = vpop.f32.mrf.mxu0
    %v745 = vadd.f32 0.0, %v744
    %746 = vmatmul.f32.gmra.mxu0 %v719
    %v747 = vpop.f32.mrf.mxu0
    %v748 = vadd.f32 0.0, %v747
    %749 = vmatmul.f32.gmra.mxu0 %v722
    %v750 = vpop.f32.mrf.mxu0
    %v751 = vadd.f32 0.0, %v750
    %752 = vdwg.mxu0
    %v753 = vld [vmem:[#allocation17] sm:$0xff]
    %v754 = vld [vmem:[#allocation17 + $0x8] sm:$0xff]
    %v755 = vld [vmem:[#allocation17 + $0x10] sm:$0xff]
    %v756 = vld [vmem:[#allocation17 + $0x18] sm:$0xff]
    %v758 = vsel %vm533, %v753, 0
    %v761 = vsel %vm533, %v754, 0
    %v764 = vsel %vm533, %v755, 0
    %v767 = vsel %vm533, %v756, 0
    %769 = vmatpush.msra.mxu0 0.0
    %770 = vmatpush.msra.mxu0 0.0
    %771 = vmatpush.msra.mxu0 0.0
    %772 = vmatpush.msra.mxu0 0.0
    %773 = vmatpush.msra.mxu0 0.0
    %774 = vmatpush.msra.mxu0 0.0
    %775 = vmatpush.msra.mxu0 0.0
    %776 = vmatpush.msra.mxu0 0.0
    %777 = vmatpush.msra.mxu0 0.0
    %778 = vmatpush.msra.mxu0 0.0
    %779 = vmatpush.msra.mxu0 0.0
    %780 = vmatpush.msra.mxu0 0.0
    %781 = vmatpush.msra.mxu0 %v573
    %782 = vmatpush.msra.mxu0 %v570
    %783 = vmatpush.msra.mxu0 %v567
    %784 = vmatpush.msra.mxu0 %v564
    %785 = vmatmul.f32.gmra.mxu0 %v758
    %v786 = vpop.f32.mrf.mxu0
    %v787 = vadd.f32 0.0, %v786
    %788 = vmatmul.f32.gmra.mxu0 %v761
    %v789 = vpop.f32.mrf.mxu0
    %v790 = vadd.f32 0.0, %v789
    %791 = vmatmul.f32.gmra.mxu0 %v764
    %v792 = vpop.f32.mrf.mxu0
    %v793 = vadd.f32 0.0, %v792
    %794 = vmatmul.f32.gmra.mxu0 %v767
    %v795 = vpop.f32.mrf.mxu0
    %v796 = vadd.f32 0.0, %v795
    %797 = vdwg.mxu0
    %v798 = vld [vmem:[#allocation19] sm:$0xff]
    %v799 = vld [vmem:[#allocation19 + $0x8] sm:$0xff]
    %v800 = vld [vmem:[#allocation19 + $0x10] sm:$0xff]
    %v801 = vld [vmem:[#allocation19 + $0x18] sm:$0xff]
    %v803 = vsel %vm533, %v798, 0
    %v806 = vsel %vm533, %v799, 0
    %v809 = vsel %vm533, %v800, 0
    %v812 = vsel %vm533, %v801, 0
    %814 = vmatpush.msra.mxu0 0.0
    %815 = vmatpush.msra.mxu0 0.0
    %816 = vmatpush.msra.mxu0 0.0
    %817 = vmatpush.msra.mxu0 0.0
    %818 = vmatpush.msra.mxu0 0.0
    %819 = vmatpush.msra.mxu0 0.0
    %820 = vmatpush.msra.mxu0 0.0
    %821 = vmatpush.msra.mxu0 0.0
    %822 = vmatpush.msra.mxu0 0.0
    %823 = vmatpush.msra.mxu0 0.0
    %824 = vmatpush.msra.mxu0 0.0
    %825 = vmatpush.msra.mxu0 0.0
    %826 = vmatpush.msra.mxu0 %v706
    %827 = vmatpush.msra.mxu0 %v703
    %828 = vmatpush.msra.mxu0 %v700
    %829 = vmatpush.msra.mxu0 %v697
    %830 = vmatmul.f32.gmra.mxu0 %v803
    %v831 = vpop.f32.mrf.mxu0
    %v832 = vadd.f32 0.0, %v831
    %833 = vmatmul.f32.gmra.mxu0 %v806
    %v834 = vpop.f32.mrf.mxu0
    %v835 = vadd.f32 0.0, %v834
    %836 = vmatmul.f32.gmra.mxu0 %v809
    %v837 = vpop.f32.mrf.mxu0
    %v838 = vadd.f32 0.0, %v837
    %839 = vmatmul.f32.gmra.mxu0 %v812
    %v840 = vpop.f32.mrf.mxu0
    %v841 = vadd.f32 0.0, %v840
    %842 = vdwg.mxu0
    %v843 = vpack.c.bf16 %v745, %v742
    %v844 = vpack.c.bf16 %v751, %v748
    %v845 = vpack.c.bf16 %v790, %v787
    %v846 = vpack.c.bf16 %v796, %v793
    %v863 = vunpack.c.l.b16 %v424
    %v864 = vunpack.c.l.b16 %v425
    %v865 = vunpack.c.l.b16 %v426
    %v866 = vunpack.c.l.b16 %v427
    %v867 = vunpack.c.l.b16 %v428
    %v868 = vunpack.c.l.b16 %v429
    %v869 = vunpack.c.l.b16 %v430
    %v870 = vunpack.c.l.b16 %v431
    %v871 = vunpack.c.l.b16 %v432
    %v872 = vunpack.c.l.b16 %v433
    %v873 = vunpack.c.l.b16 %v434
    %v874 = vunpack.c.l.b16 %v435
    %v875 = vunpack.c.l.b16 %v436
    %v876 = vunpack.c.l.b16 %v437
    %v877 = vunpack.c.l.b16 %v438
    %v878 = vunpack.c.l.b16 %v439
    %v879 = vpack.c.b16 %v864, %v863
    %v880 = vpack.c.b16 %v866, %v865
    %v881 = vpack.c.b16 %v868, %v867
    %v882 = vpack.c.b16 %v870, %v869
    %v883 = vpack.c.b16 %v872, %v871
    %v884 = vpack.c.b16 %v874, %v873
    %v885 = vpack.c.b16 %v876, %v875
    %v886 = vpack.c.b16 %v878, %v877
    %895 = vmatpush.bf16.msra.mxu0 %v886
    %896 = vmatpush.bf16.msra.mxu0 %v885
    %897 = vmatpush.bf16.msra.mxu0 %v884
    %898 = vmatpush.bf16.msra.mxu0 %v883
    %899 = vmatpush.bf16.msra.mxu0 %v882
    %900 = vmatpush.bf16.msra.mxu0 %v881
    %901 = vmatpush.bf16.msra.mxu0 %v880
    %902 = vmatpush.bf16.msra.mxu0 %v879
    %903 = vmatmul.bf16.gmra.mxu0 %v845
    %v904 = vpop.f32.mrf.mxu0
    %v905 = vadd.f32 0.0, %v904
    %v906 = vpop.f32.mrf.mxu0
    %v907 = vadd.f32 0.0, %v906
    %908 = vmatmul.bf16.gmra.mxu0 %v846
    %v909 = vpop.f32.mrf.mxu0
    %v910 = vadd.f32 0.0, %v909
    %v911 = vpop.f32.mrf.mxu0
    %v912 = vadd.f32 0.0, %v911
    %913 = vdwg.mxu0
    %v930 = vunpack.c.l.b16 %v408
    %v931 = vunpack.c.l.b16 %v409
    %v932 = vunpack.c.l.b16 %v410
    %v933 = vunpack.c.l.b16 %v411
    %v934 = vunpack.c.l.b16 %v412
    %v935 = vunpack.c.l.b16 %v413
    %v936 = vunpack.c.l.b16 %v414
    %v937 = vunpack.c.l.b16 %v415
    %v938 = vunpack.c.l.b16 %v416
    %v939 = vunpack.c.l.b16 %v417
    %v940 = vunpack.c.l.b16 %v418
    %v941 = vunpack.c.l.b16 %v419
    %v942 = vunpack.c.l.b16 %v420
    %v943 = vunpack.c.l.b16 %v421
    %v944 = vunpack.c.l.b16 %v422
    %v945 = vunpack.c.l.b16 %v423
    %v946 = vpack.c.b16 %v931, %v930
    %v947 = vpack.c.b16 %v933, %v932
    %v948 = vpack.c.b16 %v935, %v934
    %v949 = vpack.c.b16 %v937, %v936
    %v950 = vpack.c.b16 %v939, %v938
    %v951 = vpack.c.b16 %v941, %v940
    %v952 = vpack.c.b16 %v943, %v942
    %v953 = vpack.c.b16 %v945, %v944
    %962 = vmatpush.bf16.msra.mxu0 %v953
    %963 = vmatpush.bf16.msra.mxu0 %v952
    %964 = vmatpush.bf16.msra.mxu0 %v951
    %965 = vmatpush.bf16.msra.mxu0 %v950
    %966 = vmatpush.bf16.msra.mxu0 %v949
    %967 = vmatpush.bf16.msra.mxu0 %v948
    %968 = vmatpush.bf16.msra.mxu0 %v947
    %969 = vmatpush.bf16.msra.mxu0 %v946
    %970 = vmatmul.bf16.gmra.mxu0 %v843
    %v971 = vpop.f32.mrf.mxu0
    %v972 = vadd.f32 %v905, %v971
    %v973 = vpop.f32.mrf.mxu0
    %v974 = vadd.f32 %v907, %v973
    %975 = vmatmul.bf16.gmra.mxu0 %v844
    %v976 = vpop.f32.mrf.mxu0
    %v977 = vadd.f32 %v910, %v976
    %v978 = vpop.f32.mrf.mxu0
    %v979 = vadd.f32 %v912, %v978
    %980 = vdwg.mxu0
    %v981 = vadd.f32 %v972, %v832
    %v982 = vadd.f32 %v974, %v835
    %v983 = vadd.f32 %v977, %v838
    %v984 = vadd.f32 %v979, %v841
    %v985 = vld [vmem:[#allocation20] sm:$0xff]
    %v986 = vld [vmem:[#allocation20 + $0x8] sm:$0xff]
    %v987 = vld [vmem:[#allocation20 + $0x10] sm:$0xff]
    %v988 = vld [vmem:[#allocation20 + $0x18] sm:$0xff]
    %990 = vset.pattern.permute.xlu0 0
    %991 = vperm.xlu0 %990, %v985
    %v992 = vpop.permute.xlu0 %991
    %995 = vset.pattern.permute.xlu0 0
    %996 = vperm.xlu0 %995, %v986
    %v997 = vpop.permute.xlu0 %996
    %1000 = vset.pattern.permute.xlu0 0
    %1001 = vperm.xlu0 %1000, %v987
    %v1002 = vpop.permute.xlu0 %1001
    %1005 = vset.pattern.permute.xlu0 0
    %1006 = vperm.xlu0 %1005, %v988
    %v1007 = vpop.permute.xlu0 %1006
    %v1009 = vadd.f32 %v981, %v992
    %v1010 = vadd.f32 %v982, %v997
    %v1011 = vadd.f32 %v983, %v1002
    %v1012 = vadd.f32 %v984, %v1007
    %v1013 = vmax.f32 %v1009, 0.0
    %v1014 = vmax.f32 %v1010, 0.0
    %v1015 = vmax.f32 %v1011, 0.0
    %v1016 = vmax.f32 %v1012, 0.0
    %v1017 = vld [vmem:[#allocation22] sm:$0xff]
    %v1018 = vld [vmem:[#allocation22 + $0x8] sm:$0xff]
    %v1019 = vld [vmem:[#allocation22 + $0x10] sm:$0xff]
    %v1020 = vld [vmem:[#allocation22 + $0x18] sm:$0xff]
    %v1021 = vld [vmem:[#allocation23] sm:$0xff]
    %v1022 = vld [vmem:[#allocation23 + $0x8] sm:$0xff]
    %v1023 = vld [vmem:[#allocation23 + $0x10] sm:$0xff]
    %v1024 = vld [vmem:[#allocation23 + $0x18] sm:$0xff]
    %1026 = vset.pattern.permute.xlu0 0
    %1027 = vperm.xlu0 %1026, %v1021
    %v1028 = vpop.permute.xlu0 %1027
    %1031 = vset.pattern.permute.xlu0 0
    %1032 = vperm.xlu0 %1031, %v1022
    %v1033 = vpop.permute.xlu0 %1032
    %1036 = vset.pattern.permute.xlu0 0
    %1037 = vperm.xlu0 %1036, %v1023
    %v1038 = vpop.permute.xlu0 %1037
    %1041 = vset.pattern.permute.xlu0 0
    %1042 = vperm.xlu0 %1041, %v1024
    %v1043 = vpop.permute.xlu0 %1042
    %v1046 = vsel %vm533, %v1017, 0
    %v1049 = vsel %vm533, %v1018, 0
    %v1052 = vsel %vm533, %v1019, 0
    %v1055 = vsel %vm533, %v1020, 0
    %1057 = vmatpush.msra.mxu0 0.0
    %1058 = vmatpush.msra.mxu0 0.0
    %1059 = vmatpush.msra.mxu0 0.0
    %1060 = vmatpush.msra.mxu0 0.0
    %1061 = vmatpush.msra.mxu0 0.0
    %1062 = vmatpush.msra.mxu0 0.0
    %1063 = vmatpush.msra.mxu0 0.0
    %1064 = vmatpush.msra.mxu0 0.0
    %1065 = vmatpush.msra.mxu0 0.0
    %1066 = vmatpush.msra.mxu0 0.0
    %1067 = vmatpush.msra.mxu0 0.0
    %1068 = vmatpush.msra.mxu0 0.0
    %1069 = vmatpush.msra.mxu0 %v1016
    %1070 = vmatpush.msra.mxu0 %v1015
    %1071 = vmatpush.msra.mxu0 %v1014
    %1072 = vmatpush.msra.mxu0 %v1013
    %1073 = vmatmul.f32.gmra.mxu0 %v1046
    %v1074 = vpop.f32.mrf.mxu0
    %v1075 = vadd.f32 %v1028, %v1074
    %1076 = vmatmul.f32.gmra.mxu0 %v1049
    %v1077 = vpop.f32.mrf.mxu0
    %v1078 = vadd.f32 %v1033, %v1077
    %1079 = vmatmul.f32.gmra.mxu0 %v1052
    %v1080 = vpop.f32.mrf.mxu0
    %v1081 = vadd.f32 %v1038, %v1080
    %1082 = vmatmul.f32.gmra.mxu0 %v1055
    %v1083 = vpop.f32.mrf.mxu0
    %v1084 = vadd.f32 %v1043, %v1083
    %1085 = vdwg.mxu0
    %v1086 = vpack.c.bf16 %v1078, %v1075
    %v1087 = vpack.c.bf16 %v1084, %v1081
    %v1104 = vunpack.c.l.b16 %v392
    %v1105 = vunpack.c.l.b16 %v393
    %v1106 = vunpack.c.l.b16 %v394
    %v1107 = vunpack.c.l.b16 %v395
    %v1108 = vunpack.c.l.b16 %v396
    %v1109 = vunpack.c.l.b16 %v397
    %v1110 = vunpack.c.l.b16 %v398
    %v1111 = vunpack.c.l.b16 %v399
    %v1112 = vunpack.c.l.b16 %v400
    %v1113 = vunpack.c.l.b16 %v401
    %v1114 = vunpack.c.l.b16 %v402
    %v1115 = vunpack.c.l.b16 %v403
    %v1116 = vunpack.c.l.b16 %v404
    %v1117 = vunpack.c.l.b16 %v405
    %v1118 = vunpack.c.l.b16 %v406
    %v1119 = vunpack.c.l.b16 %v407
    %v1120 = vpack.c.b16 %v1105, %v1104
    %v1121 = vpack.c.b16 %v1107, %v1106
    %v1122 = vpack.c.b16 %v1109, %v1108
    %v1123 = vpack.c.b16 %v1111, %v1110
    %v1124 = vpack.c.b16 %v1113, %v1112
    %v1125 = vpack.c.b16 %v1115, %v1114
    %v1126 = vpack.c.b16 %v1117, %v1116
    %v1127 = vpack.c.b16 %v1119, %v1118
    %1136 = vmatpush.bf16.msra.mxu0 %v1127
    %1137 = vmatpush.bf16.msra.mxu0 %v1126
    %1138 = vmatpush.bf16.msra.mxu0 %v1125
    %1139 = vmatpush.bf16.msra.mxu0 %v1124
    %1140 = vmatpush.bf16.msra.mxu0 %v1123
    %1141 = vmatpush.bf16.msra.mxu0 %v1122
    %1142 = vmatpush.bf16.msra.mxu0 %v1121
    %1143 = vmatpush.bf16.msra.mxu0 %v1120
    %1144 = vmatmul.bf16.gmra.mxu0 %v1086
    %v1145 = vpop.f32.mrf.mxu0
    %v1146 = vadd.f32 0.0, %v1145
    %v1147 = vpop.f32.mrf.mxu0
    %v1148 = vadd.f32 0.0, %v1147
    %1149 = vmatmul.bf16.gmra.mxu0 %v1087
    %v1150 = vpop.f32.mrf.mxu0
    %v1151 = vadd.f32 0.0, %v1150
    %v1152 = vpop.f32.mrf.mxu0
    %v1153 = vadd.f32 0.0, %v1152
    %1154 = vdwg.mxu0
    %v1156 = vperm.slane %v440, 0
    %v1158 = vmul.f32 %v1146, %v1156
    %v1159 = vmul.f32 %v1148, %v1156
    %v1160 = vmul.f32 %v1151, %v1156
    %v1161 = vmul.f32 %v1153, %v1156
    %v1162 = vld [vmem:[#allocation25] sm:$0xff]
    %v1163 = vld [vmem:[#allocation25 + $0x8] sm:$0xff]
    %v1164 = vld [vmem:[#allocation25 + $0x10] sm:$0xff]
    %v1165 = vld [vmem:[#allocation25 + $0x18] sm:$0xff]
    %v1166 = vld [vmem:[#allocation26] sm:$0xff]
    %v1167 = vld [vmem:[#allocation26 + $0x8] sm:$0xff]
    %v1168 = vld [vmem:[#allocation26 + $0x10] sm:$0xff]
    %v1169 = vld [vmem:[#allocation26 + $0x18] sm:$0xff]
    %v1171 = vsel %vm533, %v1166, 0
    %v1174 = vsel %vm533, %v1167, 0
    %v1177 = vsel %vm533, %v1168, 0
    %v1180 = vsel %vm533, %v1169, 0
    %1182 = vmatpush.msra.mxu0 0.0
    %1183 = vmatpush.msra.mxu0 0.0
    %1184 = vmatpush.msra.mxu0 0.0
    %1185 = vmatpush.msra.mxu0 0.0
    %1186 = vmatpush.msra.mxu0 0.0
    %1187 = vmatpush.msra.mxu0 0.0
    %1188 = vmatpush.msra.mxu0 0.0
    %1189 = vmatpush.msra.mxu0 0.0
    %1190 = vmatpush.msra.mxu0 0.0
    %1191 = vmatpush.msra.mxu0 0.0
    %1192 = vmatpush.msra.mxu0 0.0
    %1193 = vmatpush.msra.mxu0 0.0
    %1194 = vmatpush.msra.mxu0 %v1161
    %1195 = vmatpush.msra.mxu0 %v1160
    %1196 = vmatpush.msra.mxu0 %v1159
    %1197 = vmatpush.msra.mxu0 %v1158
    %1198 = vmatmul.f32.gmra.mxu0 %v1171
    %v1199 = vpop.f32.mrf.mxu0
    %v1200 = vadd.f32 0.0, %v1199
    %1201 = vmatmul.f32.gmra.mxu0 %v1174
    %v1202 = vpop.f32.mrf.mxu0
    %v1203 = vadd.f32 0.0, %v1202
    %1204 = vmatmul.f32.gmra.mxu0 %v1177
    %v1205 = vpop.f32.mrf.mxu0
    %v1206 = vadd.f32 0.0, %v1205
    %1207 = vmatmul.f32.gmra.mxu0 %v1180
    %v1208 = vpop.f32.mrf.mxu0
    %v1209 = vadd.f32 0.0, %v1208
    %1210 = vdwg.mxu0
    %v1212 = vsel %vm533, %v1162, 0
    %v1215 = vsel %vm533, %v1163, 0
    %v1218 = vsel %vm533, %v1164, 0
    %v1221 = vsel %vm533, %v1165, 0
    %1223 = vmatpush.msra.mxu0 0.0
    %1224 = vmatpush.msra.mxu0 0.0
    %1225 = vmatpush.msra.mxu0 0.0
    %1226 = vmatpush.msra.mxu0 0.0
    %1227 = vmatpush.msra.mxu0 0.0
    %1228 = vmatpush.msra.mxu0 0.0
    %1229 = vmatpush.msra.mxu0 0.0
    %1230 = vmatpush.msra.mxu0 0.0
    %1231 = vmatpush.msra.mxu0 0.0
    %1232 = vmatpush.msra.mxu0 0.0
    %1233 = vmatpush.msra.mxu0 0.0
    %1234 = vmatpush.msra.mxu0 0.0
    %1235 = vmatpush.msra.mxu0 %v573
    %1236 = vmatpush.msra.mxu0 %v570
    %1237 = vmatpush.msra.mxu0 %v567
    %1238 = vmatpush.msra.mxu0 %v564
    %1239 = vmatmul.f32.gmra.mxu0 %v1212
    %v1240 = vpop.f32.mrf.mxu0
    %v1241 = vadd.f32 %v1200, %v1240
    %1242 = vmatmul.f32.gmra.mxu0 %v1215
    %v1243 = vpop.f32.mrf.mxu0
    %v1244 = vadd.f32 %v1203, %v1243
    %1245 = vmatmul.f32.gmra.mxu0 %v1218
    %v1246 = vpop.f32.mrf.mxu0
    %v1247 = vadd.f32 %v1206, %v1246
    %1248 = vmatmul.f32.gmra.mxu0 %v1221
    %v1249 = vpop.f32.mrf.mxu0
    %v1250 = vadd.f32 %v1209, %v1249
    %1251 = vdwg.mxu0
    %v1252 = vld [vmem:[%s47] sm:$0xff]
    %v1253 = vld [vmem:[%s47 + $0x8] sm:$0xff]
    %v1254 = vld [vmem:[%s47 + $0x10] sm:$0xff]
    %v1255 = vld [vmem:[%s47 + $0x18] sm:$0xff]
    %1257 = vset.pattern.permute.xlu0 0
    %1258 = vperm.xlu0 %1257, %v1252
    %v1259 = vpop.permute.xlu0 %1258
    %1262 = vset.pattern.permute.xlu0 0
    %1263 = vperm.xlu0 %1262, %v1253
    %v1264 = vpop.permute.xlu0 %1263
    %1267 = vset.pattern.permute.xlu0 0
    %1268 = vperm.xlu0 %1267, %v1254
    %v1269 = vpop.permute.xlu0 %1268
    %1272 = vset.pattern.permute.xlu0 0
    %1273 = vperm.xlu0 %1272, %v1255
    %v1274 = vpop.permute.xlu0 %1273
    %v1276 = vadd.f32 %v1241, %v1259
    %v1277 = vadd.f32 %v1244, %v1264
    %v1278 = vadd.f32 %v1247, %v1269
    %v1279 = vadd.f32 %v1250, %v1274
    %v1280 = vmax.f32 %v1276, 0.0
    %v1281 = vmax.f32 %v1277, 0.0
    %v1282 = vmax.f32 %v1278, 0.0
    %v1283 = vmax.f32 %v1279, 0.0
    %v1284 = vld [vmem:[%s49] sm:$0xff]
    %v1285 = vld [vmem:[%s49 + $0x8] sm:$0xff]
    %v1286 = vld [vmem:[%s49 + $0x10] sm:$0xff]
    %v1287 = vld [vmem:[%s49 + $0x18] sm:$0xff]
    %v1288 = vld [vmem:[%s51] sm:$0xff]
    %v1289 = vld [vmem:[%s51 + $0x8] sm:$0xff]
    %v1290 = vld [vmem:[%s51 + $0x10] sm:$0xff]
    %v1291 = vld [vmem:[%s51 + $0x18] sm:$0xff]
    %1293 = vset.pattern.permute.xlu0 0
    %1294 = vperm.xlu0 %1293, %v1288
    %v1295 = vpop.permute.xlu0 %1294
    %1298 = vset.pattern.permute.xlu0 0
    %1299 = vperm.xlu0 %1298, %v1289
    %v1300 = vpop.permute.xlu0 %1299
    %1303 = vset.pattern.permute.xlu0 0
    %1304 = vperm.xlu0 %1303, %v1290
    %v1305 = vpop.permute.xlu0 %1304
    %1308 = vset.pattern.permute.xlu0 0
    %1309 = vperm.xlu0 %1308, %v1291
    %v1310 = vpop.permute.xlu0 %1309
    %v1313 = vsel %vm533, %v1284, 0
    %v1316 = vsel %vm533, %v1285, 0
    %v1319 = vsel %vm533, %v1286, 0
    %v1322 = vsel %vm533, %v1287, 0
    %1324 = vmatpush.msra.mxu0 0.0
    %1325 = vmatpush.msra.mxu0 0.0
    %1326 = vmatpush.msra.mxu0 0.0
    %1327 = vmatpush.msra.mxu0 0.0
    %1328 = vmatpush.msra.mxu0 0.0
    %1329 = vmatpush.msra.mxu0 0.0
    %1330 = vmatpush.msra.mxu0 0.0
    %1331 = vmatpush.msra.mxu0 0.0
    %1332 = vmatpush.msra.mxu0 0.0
    %1333 = vmatpush.msra.mxu0 0.0
    %1334 = vmatpush.msra.mxu0 0.0
    %1335 = vmatpush.msra.mxu0 0.0
    %1336 = vmatpush.msra.mxu0 %v1283
    %1337 = vmatpush.msra.mxu0 %v1282
    %1338 = vmatpush.msra.mxu0 %v1281
    %1339 = vmatpush.msra.mxu0 %v1280
    %1340 = vmatmul.f32.gmra.mxu0 %v1313
    %v1341 = vpop.f32.mrf.mxu0
    %v1342 = vadd.f32 %v1295, %v1341
    %1343 = vmatmul.f32.gmra.mxu0 %v1316
    %v1344 = vpop.f32.mrf.mxu0
    %v1345 = vadd.f32 %v1300, %v1344
    %1346 = vmatmul.f32.gmra.mxu0 %v1319
    %v1347 = vpop.f32.mrf.mxu0
    %v1348 = vadd.f32 %v1305, %v1347
    %1349 = vmatmul.f32.gmra.mxu0 %v1322
    %v1350 = vpop.f32.mrf.mxu0
    %v1351 = vadd.f32 %v1310, %v1350
    %1352 = vdwg.mxu0
    %s1353 = scalar_lea.vmem [#allocation16], 32
    %v1354 = vld [vmem:[%s1353] sm:$0xff]
    %v1355 = vld [vmem:[%s1353 + $0x8] sm:$0xff]
    %v1356 = vld [vmem:[%s1353 + $0x10] sm:$0xff]
    %v1357 = vld [vmem:[%s1353 + $0x18] sm:$0xff]
    %v1359 = vsel %vm533, %v1354, 0
    %v1362 = vsel %vm533, %v1355, 0
    %v1365 = vsel %vm533, %v1356, 0
    %v1368 = vsel %vm533, %v1357, 0
    %1370 = vmatpush.msra.mxu0 0.0
    %1371 = vmatpush.msra.mxu0 0.0
    %1372 = vmatpush.msra.mxu0 0.0
    %1373 = vmatpush.msra.mxu0 0.0
    %1374 = vmatpush.msra.mxu0 0.0
    %1375 = vmatpush.msra.mxu0 0.0
    %1376 = vmatpush.msra.mxu0 0.0
    %1377 = vmatpush.msra.mxu0 0.0
    %1378 = vmatpush.msra.mxu0 0.0
    %1379 = vmatpush.msra.mxu0 0.0
    %1380 = vmatpush.msra.mxu0 0.0
    %1381 = vmatpush.msra.mxu0 0.0
    %1382 = vmatpush.msra.mxu0 %v1351
    %1383 = vmatpush.msra.mxu0 %v1348
    %1384 = vmatpush.msra.mxu0 %v1345
    %1385 = vmatpush.msra.mxu0 %v1342
    %1386 = vmatmul.f32.gmra.mxu0 %v1359
    %v1387 = vpop.f32.mrf.mxu0
    %v1388 = vadd.f32 0.0, %v1387
    %1389 = vmatmul.f32.gmra.mxu0 %v1362
    %v1390 = vpop.f32.mrf.mxu0
    %v1391 = vadd.f32 0.0, %v1390
    %1392 = vmatmul.f32.gmra.mxu0 %v1365
    %v1393 = vpop.f32.mrf.mxu0
    %v1394 = vadd.f32 0.0, %v1393
    %1395 = vmatmul.f32.gmra.mxu0 %v1368
    %v1396 = vpop.f32.mrf.mxu0
    %v1397 = vadd.f32 0.0, %v1396
    %1398 = vdwg.mxu0
    %s1399 = scalar_lea.vmem [#allocation17], 32
    %v1400 = vld [vmem:[%s1399] sm:$0xff]
    %v1401 = vld [vmem:[%s1399 + $0x8] sm:$0xff]
    %v1402 = vld [vmem:[%s1399 + $0x10] sm:$0xff]
    %v1403 = vld [vmem:[%s1399 + $0x18] sm:$0xff]
    %v1405 = vsel %vm533, %v1400, 0
    %v1408 = vsel %vm533, %v1401, 0
    %v1411 = vsel %vm533, %v1402, 0
    %v1414 = vsel %vm533, %v1403, 0
    %1416 = vmatpush.msra.mxu0 0.0
    %1417 = vmatpush.msra.mxu0 0.0
    %1418 = vmatpush.msra.mxu0 0.0
    %1419 = vmatpush.msra.mxu0 0.0
    %1420 = vmatpush.msra.mxu0 0.0
    %1421 = vmatpush.msra.mxu0 0.0
    %1422 = vmatpush.msra.mxu0 0.0
    %1423 = vmatpush.msra.mxu0 0.0
    %1424 = vmatpush.msra.mxu0 0.0
    %1425 = vmatpush.msra.mxu0 0.0
    %1426 = vmatpush.msra.mxu0 0.0
    %1427 = vmatpush.msra.mxu0 0.0
    %1428 = vmatpush.msra.mxu0 %v1351
    %1429 = vmatpush.msra.mxu0 %v1348
    %1430 = vmatpush.msra.mxu0 %v1345
    %1431 = vmatpush.msra.mxu0 %v1342
    %1432 = vmatmul.f32.gmra.mxu0 %v1405
    %v1433 = vpop.f32.mrf.mxu0
    %v1434 = vadd.f32 0.0, %v1433
    %1435 = vmatmul.f32.gmra.mxu0 %v1408
    %v1436 = vpop.f32.mrf.mxu0
    %v1437 = vadd.f32 0.0, %v1436
    %1438 = vmatmul.f32.gmra.mxu0 %v1411
    %v1439 = vpop.f32.mrf.mxu0
    %v1440 = vadd.f32 0.0, %v1439
    %1441 = vmatmul.f32.gmra.mxu0 %v1414
    %v1442 = vpop.f32.mrf.mxu0
    %v1443 = vadd.f32 0.0, %v1442
    %1444 = vdwg.mxu0
    %s1445 = scalar_lea.vmem [#allocation19], 32
    %v1446 = vld [vmem:[%s1445] sm:$0xff]
    %v1447 = vld [vmem:[%s1445 + $0x8] sm:$0xff]
    %v1448 = vld [vmem:[%s1445 + $0x10] sm:$0xff]
    %v1449 = vld [vmem:[%s1445 + $0x18] sm:$0xff]
    %v1451 = vsel %vm533, %v1446, 0
    %v1454 = vsel %vm533, %v1447, 0
    %v1457 = vsel %vm533, %v1448, 0
    %v1460 = vsel %vm533, %v1449, 0
    %1462 = vmatpush.msra.mxu0 0.0
    %1463 = vmatpush.msra.mxu0 0.0
    %1464 = vmatpush.msra.mxu0 0.0
    %1465 = vmatpush.msra.mxu0 0.0
    %1466 = vmatpush.msra.mxu0 0.0
    %1467 = vmatpush.msra.mxu0 0.0
    %1468 = vmatpush.msra.mxu0 0.0
    %1469 = vmatpush.msra.mxu0 0.0
    %1470 = vmatpush.msra.mxu0 0.0
    %1471 = vmatpush.msra.mxu0 0.0
    %1472 = vmatpush.msra.mxu0 0.0
    %1473 = vmatpush.msra.mxu0 0.0
    %1474 = vmatpush.msra.mxu0 %v1084
    %1475 = vmatpush.msra.mxu0 %v1081
    %1476 = vmatpush.msra.mxu0 %v1078
    %1477 = vmatpush.msra.mxu0 %v1075
    %1478 = vmatmul.f32.gmra.mxu0 %v1451
    %v1479 = vpop.f32.mrf.mxu0
    %v1480 = vadd.f32 0.0, %v1479
    %1481 = vmatmul.f32.gmra.mxu0 %v1454
    %v1482 = vpop.f32.mrf.mxu0
    %v1483 = vadd.f32 0.0, %v1482
    %1484 = vmatmul.f32.gmra.mxu0 %v1457
    %v1485 = vpop.f32.mrf.mxu0
    %v1486 = vadd.f32 0.0, %v1485
    %1487 = vmatmul.f32.gmra.mxu0 %v1460
    %v1488 = vpop.f32.mrf.mxu0
    %v1489 = vadd.f32 0.0, %v1488
    %1490 = vdwg.mxu0
    %v1491 = vpack.c.bf16 %v1391, %v1388
    %v1492 = vpack.c.bf16 %v1397, %v1394
    %v1493 = vpack.c.bf16 %v1437, %v1434
    %v1494 = vpack.c.bf16 %v1443, %v1440
    %1495 = vmatpush.bf16.msra.mxu0 %v886
    %1496 = vmatpush.bf16.msra.mxu0 %v885
    %1497 = vmatpush.bf16.msra.mxu0 %v884
    %1498 = vmatpush.bf16.msra.mxu0 %v883
    %1499 = vmatpush.bf16.msra.mxu0 %v882
    %1500 = vmatpush.bf16.msra.mxu0 %v881
    %1501 = vmatpush.bf16.msra.mxu0 %v880
    %1502 = vmatpush.bf16.msra.mxu0 %v879
    %1503 = vmatmul.bf16.gmra.mxu0 %v1493
    %v1504 = vpop.f32.mrf.mxu0
    %v1505 = vadd.f32 0.0, %v1504
    %v1506 = vpop.f32.mrf.mxu0
    %v1507 = vadd.f32 0.0, %v1506
    %1508 = vmatmul.bf16.gmra.mxu0 %v1494
    %v1509 = vpop.f32.mrf.mxu0
    %v1510 = vadd.f32 0.0, %v1509
    %v1511 = vpop.f32.mrf.mxu0
    %v1512 = vadd.f32 0.0, %v1511
    %1513 = vdwg.mxu0
    %1514 = vmatpush.bf16.msra.mxu0 %v953
    %1515 = vmatpush.bf16.msra.mxu0 %v952
    %1516 = vmatpush.bf16.msra.mxu0 %v951
    %1517 = vmatpush.bf16.msra.mxu0 %v950
    %1518 = vmatpush.bf16.msra.mxu0 %v949
    %1519 = vmatpush.bf16.msra.mxu0 %v948
    %1520 = vmatpush.bf16.msra.mxu0 %v947
    %1521 = vmatpush.bf16.msra.mxu0 %v946
    %1522 = vmatmul.bf16.gmra.mxu0 %v1491
    %v1523 = vpop.f32.mrf.mxu0
    %v1524 = vadd.f32 %v1505, %v1523
    %v1525 = vpop.f32.mrf.mxu0
    %v1526 = vadd.f32 %v1507, %v1525
    %1527 = vmatmul.bf16.gmra.mxu0 %v1492
    %v1528 = vpop.f32.mrf.mxu0
    %v1529 = vadd.f32 %v1510, %v1528
    %v1530 = vpop.f32.mrf.mxu0
    %v1531 = vadd.f32 %v1512, %v1530
    %1532 = vdwg.mxu0
    %v1533 = vadd.f32 %v1524, %v1480
    %v1534 = vadd.f32 %v1526, %v1483
    %v1535 = vadd.f32 %v1529, %v1486
    %v1536 = vadd.f32 %v1531, %v1489
    %s1537 = scalar_lea.vmem [#allocation20], 32
    %v1538 = vld [vmem:[%s1537] sm:$0xff]
    %v1539 = vld [vmem:[%s1537 + $0x8] sm:$0xff]
    %v1540 = vld [vmem:[%s1537 + $0x10] sm:$0xff]
    %v1541 = vld [vmem:[%s1537 + $0x18] sm:$0xff]
    %1543 = vset.pattern.permute.xlu0 0
    %1544 = vperm.xlu0 %1543, %v1538
    %v1545 = vpop.permute.xlu0 %1544
    %1548 = vset.pattern.permute.xlu0 0
    %1549 = vperm.xlu0 %1548, %v1539
    %v1550 = vpop.permute.xlu0 %1549
    %1553 = vset.pattern.permute.xlu0 0
    %1554 = vperm.xlu0 %1553, %v1540
    %v1555 = vpop.permute.xlu0 %1554
    %1558 = vset.pattern.permute.xlu0 0
    %1559 = vperm.xlu0 %1558, %v1541
    %v1560 = vpop.permute.xlu0 %1559
    %v1562 = vadd.f32 %v1533, %v1545
    %v1563 = vadd.f32 %v1534, %v1550
    %v1564 = vadd.f32 %v1535, %v1555
    %v1565 = vadd.f32 %v1536, %v1560
    %v1566 = vmax.f32 %v1562, 0.0
    %v1567 = vmax.f32 %v1563, 0.0
    %v1568 = vmax.f32 %v1564, 0.0
    %v1569 = vmax.f32 %v1565, 0.0
    %s1570 = scalar_lea.vmem [#allocation22], 32
    %v1571 = vld [vmem:[%s1570] sm:$0xff]
    %v1572 = vld [vmem:[%s1570 + $0x8] sm:$0xff]
    %v1573 = vld [vmem:[%s1570 + $0x10] sm:$0xff]
    %v1574 = vld [vmem:[%s1570 + $0x18] sm:$0xff]
    %s1575 = scalar_lea.vmem [#allocation23], 32
    %v1576 = vld [vmem:[%s1575] sm:$0xff]
    %v1577 = vld [vmem:[%s1575 + $0x8] sm:$0xff]
    %v1578 = vld [vmem:[%s1575 + $0x10] sm:$0xff]
    %v1579 = vld [vmem:[%s1575 + $0x18] sm:$0xff]
    %1581 = vset.pattern.permute.xlu0 0
    %1582 = vperm.xlu0 %1581, %v1576
    %v1583 = vpop.permute.xlu0 %1582
    %1586 = vset.pattern.permute.xlu0 0
    %1587 = vperm.xlu0 %1586, %v1577
    %v1588 = vpop.permute.xlu0 %1587
    %1591 = vset.pattern.permute.xlu0 0
    %1592 = vperm.xlu0 %1591, %v1578
    %v1593 = vpop.permute.xlu0 %1592
    %1596 = vset.pattern.permute.xlu0 0
    %1597 = vperm.xlu0 %1596, %v1579
    %v1598 = vpop.permute.xlu0 %1597
    %v1601 = vsel %vm533, %v1571, 0
    %v1604 = vsel %vm533, %v1572, 0
    %v1607 = vsel %vm533, %v1573, 0
    %v1610 = vsel %vm533, %v1574, 0
    %1612 = vmatpush.msra.mxu0 0.0
    %1613 = vmatpush.msra.mxu0 0.0
    %1614 = vmatpush.msra.mxu0 0.0
    %1615 = vmatpush.msra.mxu0 0.0
    %1616 = vmatpush.msra.mxu0 0.0
    %1617 = vmatpush.msra.mxu0 0.0
    %1618 = vmatpush.msra.mxu0 0.0
    %1619 = vmatpush.msra.mxu0 0.0
    %1620 = vmatpush.msra.mxu0 0.0
    %1621 = vmatpush.msra.mxu0 0.0
    %1622 = vmatpush.msra.mxu0 0.0
    %1623 = vmatpush.msra.mxu0 0.0
    %1624 = vmatpush.msra.mxu0 %v1569
    %1625 = vmatpush.msra.mxu0 %v1568
    %1626 = vmatpush.msra.mxu0 %v1567
    %1627 = vmatpush.msra.mxu0 %v1566
    %1628 = vmatmul.f32.gmra.mxu0 %v1601
    %v1629 = vpop.f32.mrf.mxu0
    %v1630 = vadd.f32 %v1583, %v1629
    %1631 = vmatmul.f32.gmra.mxu0 %v1604
    %v1632 = vpop.f32.mrf.mxu0
    %v1633 = vadd.f32 %v1588, %v1632
    %1634 = vmatmul.f32.gmra.mxu0 %v1607
    %v1635 = vpop.f32.mrf.mxu0
    %v1636 = vadd.f32 %v1593, %v1635
    %1637 = vmatmul.f32.gmra.mxu0 %v1610
    %v1638 = vpop.f32.mrf.mxu0
    %v1639 = vadd.f32 %v1598, %v1638
    %1640 = vdwg.mxu0
    %v1641 = vld [vmem:[%s53] sm:$0xff]
    %v1642 = vld [vmem:[%s53 + $0x8] sm:$0xff]
    %v1643 = vld [vmem:[%s53 + $0x10] sm:$0xff]
    %v1644 = vld [vmem:[%s53 + $0x18] sm:$0xff]
    %v1645 = vld [vmem:[%s55] sm:$0xff]
    %v1646 = vld [vmem:[%s55 + $0x8] sm:$0xff]
    %v1647 = vld [vmem:[%s55 + $0x10] sm:$0xff]
    %v1648 = vld [vmem:[%s55 + $0x18] sm:$0xff]
    %1650 = vset.pattern.permute.xlu0 0
    %1651 = vperm.xlu0 %1650, %v1645
    %v1652 = vpop.permute.xlu0 %1651
    %1655 = vset.pattern.permute.xlu0 0
    %1656 = vperm.xlu0 %1655, %v1646
    %v1657 = vpop.permute.xlu0 %1656
    %1660 = vset.pattern.permute.xlu0 0
    %1661 = vperm.xlu0 %1660, %v1647
    %v1662 = vpop.permute.xlu0 %1661
    %1665 = vset.pattern.permute.xlu0 0
    %1666 = vperm.xlu0 %1665, %v1648
    %v1667 = vpop.permute.xlu0 %1666
    %v1670 = vsel %vm533, %v1641, 0
    %v1673 = vsel %vm533, %v1642, 0
    %v1676 = vsel %vm533, %v1643, 0
    %v1679 = vsel %vm533, %v1644, 0
    %1681 = vmatpush.msra.mxu0 0.0
    %1682 = vmatpush.msra.mxu0 0.0
    %1683 = vmatpush.msra.mxu0 0.0
    %1684 = vmatpush.msra.mxu0 0.0
    %1685 = vmatpush.msra.mxu0 0.0
    %1686 = vmatpush.msra.mxu0 0.0
    %1687 = vmatpush.msra.mxu0 0.0
    %1688 = vmatpush.msra.mxu0 0.0
    %1689 = vmatpush.msra.mxu0 0.0
    %1690 = vmatpush.msra.mxu0 0.0
    %1691 = vmatpush.msra.mxu0 0.0
    %1692 = vmatpush.msra.mxu0 0.0
    %1693 = vmatpush.msra.mxu0 %v1639
    %1694 = vmatpush.msra.mxu0 %v1636
    %1695 = vmatpush.msra.mxu0 %v1633
    %1696 = vmatpush.msra.mxu0 %v1630
    %1697 = vmatmul.f32.gmra.mxu0 %v1670
    %v1698 = vpop.f32.mrf.mxu0
    %v1699 = vadd.f32 %v1652, %v1698
    %1700 = vmatmul.f32.gmra.mxu0 %v1673
    %v1701 = vpop.f32.mrf.mxu0
    %v1702 = vadd.f32 %v1657, %v1701
    %1703 = vmatmul.f32.gmra.mxu0 %v1676
    %v1704 = vpop.f32.mrf.mxu0
    %v1705 = vadd.f32 %v1662, %v1704
    %1706 = vmatmul.f32.gmra.mxu0 %v1679
    %v1707 = vpop.f32.mrf.mxu0
    %v1708 = vadd.f32 %v1667, %v1707
    %1709 = vdwg.mxu0
    %v1710 = vmax.f32 %v1699, 0.0
    %v1711 = vmax.f32 %v1702, 0.0
    %v1712 = vmax.f32 %v1705, 0.0
    %v1713 = vmax.f32 %v1708, 0.0
    %v1714 = vld [vmem:[#allocation28] sm:$0xff]
    %v1715 = vld [vmem:[#allocation28 + $0x8] sm:$0xff]
    %v1716 = vld [vmem:[#allocation28 + $0x10] sm:$0xff]
    %v1717 = vld [vmem:[#allocation28 + $0x18] sm:$0xff]
    %1719 = vset.pattern.permute.xlu0 0
    %1720 = vperm.xlu0 %1719, %v1714
    %v1721 = vpop.permute.xlu0 %1720
    %1724 = vset.pattern.permute.xlu0 0
    %1725 = vperm.xlu0 %1724, %v1715
    %v1726 = vpop.permute.xlu0 %1725
    %1729 = vset.pattern.permute.xlu0 0
    %1730 = vperm.xlu0 %1729, %v1716
    %v1731 = vpop.permute.xlu0 %1730
    %1734 = vset.pattern.permute.xlu0 0
    %1735 = vperm.xlu0 %1734, %v1717
    %v1736 = vpop.permute.xlu0 %1735
    %v1738 = vmul.f32 %v1721, %v1710
    %v1739 = vmul.f32 %v1726, %v1711
    %v1740 = vmul.f32 %v1731, %v1712
    %v1741 = vmul.f32 %v1736, %v1713
    %v1742 = vadd.f32 %v1738, %v1739
    %v1743 = vadd.f32 %v1742, %v1740
    %v1744 = vadd.f32 %v1743, %v1741
    %v1745 = vrot.slane %v1744, 4
    %v1746 = vadd.f32 %v1744, %v1745
    %v1747 = vrot.slane %v1746, 2
    %v1748 = vadd.f32 %v1746, %v1747
    %v1749 = vrot.slane %v1748, 1
    %v1750 = vadd.f32 %v1748, %v1749
    %v1751 = vld [vmem:[#allocation2] sm:$0x1]
    %1753 = vset.pattern.permute.xlu0 0
    %1754 = vperm.xlu0 %1753, %v1751
    %v1755 = vpop.permute.xlu0 %1754
    %v1757 = vperm.slane %v1755, 0
    %v1758 = vadd.f32 %v1750, %v1757
    %v1759 = vld [vmem:[%s5] sm:$0x1]
    %vm1760 = vcmp.gt.f32.partialorder %v1759, 0.0
    %v1761 = vrsqrt.pop %v579
    %v1762 = vmul.f32 %v1761, %v579
    %v1763 = vmul.f32 %v1762, %v1761
    %v1764 = vmul.f32 0.5, %v1763
    %v1765 = vsub.f32 1.5, %v1764
    %v1766 = vmul.f32 %v1761, %v1765
    %v1767 = vmul.f32 %v579, %v1766
    %vm1768 = vcmp.eq.f32.partialorder %v579, inf
    %v1769 = vsel %vm1768, %v579, %v1767
    %vm1770 = vcmp.eq.f32.partialorder %v579, 0.0
    %v1771 = vand.u32 %v579, 2147483648
    %v1772 = vsel %vm1770, %v1771, %v1769
    %v1773 = vmul.f32 %v1772, 0.5
    %v1774 = vsel %vm1760, %v1773, %v1758
    %1775 = vst [vmem:[%s61] sm:$0x1] %v1774
    // Predicated region
    $region190: #{neural_pcg_forward.1} parent=1 // pred_check
      _
    $region191: #{neural_pcg_forward.1} parent=1 // pred_check_branch
      %1777 = sbr.rel (0) target = $region193
    $region192: #{neural_pcg_forward.1} parent=1 // pred_region
      _
    $region193: #{neural_pcg_forward.1} parent=1 // pred_fallthru
      _
    // Predicated region
    $region194: #{neural_pcg_forward.1} parent=1 // pred_check
      _
    $region195: #{neural_pcg_forward.1} parent=1 // pred_check_branch
      %1779 = sbr.rel (0) target = $region197
    $region196: #{neural_pcg_forward.1} parent=1 // pred_region
      _
    $region197: #{neural_pcg_forward.1} parent=1 // pred_fallthru
      _
    %1780 = vsyncpa [#allocation4], 1
    %1781 = vsyncpa [#allocation6], 1
    %1782 = vsyncpa [#allocation9], 1
    %1783 = vsyncpa [#allocation12], 1
    %1784 = vsyncpa [#allocation15], 1
    %1785 = vsyncpa [#allocation18], 1
    %1786 = vsyncpa [#allocation21], 1
    %1787 = vsyncpa [#allocation24], 1
    %1788 = vsyncpa [#allocation27], 1

</llo_original>
